<compile_context>
chip_gen: v5e
topology: v5e:2x2
jax: 0.10.0
libtpu: 0.0.40
codegen_flags: <defaults>
</compile_context>

<pallas_src>
import functools

import jax
import jax.numpy as jnp
import numpy as np
from jax import lax
from jax.experimental import pallas as pl
from jax.experimental.pallas import tpu as pltpu


def _round_up(x, m):
    return ((x + m - 1) // m) * m


def _bilinear_matrix(in_size, out_size):
    """Interpolation matrix matching F.interpolate(mode='bilinear', align_corners=False)."""
    dst = np.arange(out_size, dtype=np.float64)
    src = np.maximum((in_size / out_size) * (dst + 0.5) - 0.5, 0.0)
    i0 = np.clip(np.floor(src).astype(np.int64), 0, in_size - 1)
    i1 = np.minimum(i0 + 1, in_size - 1)
    lam = src - i0
    A = np.zeros((out_size, in_size), dtype=np.float32)
    A[np.arange(out_size), i0] += (1.0 - lam).astype(np.float32)
    A[np.arange(out_size), i1] += lam.astype(np.float32)
    return jnp.asarray(A)


def _uncer_head_kernel(x_ref, w_ref, b_ref, m_ref, *rest, H, W, upsample):
    """One (batch, channel-tile) grid step.

    x_ref  : (1, C_TILE, H*W)   input channel tile (flattened spatial)
    w_ref  : (C_TILE, 9)        conv weights, tap index = kh*3 + kw
    b_ref  : (1,)      SMEM     conv bias
    m_ref  : (2, H*W)           column keep-masks for kw==0 / kw==2 taps
    [ah_ref: (H_out, H) bf16, awt_ref: (W, W_out) bf16]  only when upsample
    o_ref  : (1, 1, H_out, W_out) or (1, 1, H*W)
    yacc_ref: (9, H*W) f32 VMEM  per-tap channel-reduced accumulator
    cf_ref : (1, H*W)  f32 VMEM  combined (pre-sigmoid) conv output
    [y2d_ref: (H, W)  bf16 VMEM]  spatial view used by the upsample matmuls
    """
    if upsample:
        ah_ref, awt_ref, o_ref, yacc_ref, cf_ref, y2d_ref = rest
    else:
        o_ref, yacc_ref, cf_ref = rest

    HW = H * W
    ct = pl.program_id(1)

    @pl.when(ct == 0)
    def _():
        yacc_ref[...] = jnp.zeros_like(yacc_ref)

    # Channel reduction on the MXU: (9, C_TILE) @ (C_TILE, H*W) -> (9, H*W),
    # accumulated in f32 across channel tiles.  HIGHEST keeps f32 accuracy.
    xv = x_ref[0].astype(jnp.float32)
    yacc_ref[...] += lax.dot_general(
        w_ref[...], xv,
        dimension_numbers=(((0,), (0,)), ((), ())),         # w^T @ x
        preferred_element_type=jnp.float32,
        precision=lax.Precision.HIGHEST)

    @pl.when(ct == pl.num_programs(1) - 1)
    def _():
        # Combine the 9 taps in flattened (p = h*W + w) space: tap (kh, kw)
        # contributes yacc[t, p + s] with s = (kh-1)*W + (kw-1) to output p.
        # The static slice bounds handle the top/bottom row boundaries; the
        # precomputed column masks zero the w==0 / w==W-1 wrap positions.
        cf_ref[...] = jnp.zeros_like(cf_ref)
        for kh in range(3):
            for kw in range(3):
                t = kh * 3 + kw
                s = (kh - 1) * W + (kw - 1)
                lo = max(0, -s)
                hi = min(HW, HW - s)
                seg = yacc_ref[t, lo + s:hi + s]
                if kw == 0:
                    seg = seg * m_ref[0, lo:hi]
                elif kw == 2:
                    seg = seg * m_ref[1, lo:hi]
                cf_ref[0, lo:hi] += seg

        bias = b_ref[0]
        if upsample:
            # Un-flatten (1, H*W) -> (H, W) via static per-row copies fused
            # with bias + sigmoid + bf16 cast, then two bf16 MXU matmuls.
            for h in range(H):
                row = jax.nn.sigmoid(cf_ref[0, h * W:(h + 1) * W] + bias)
                y2d_ref[h, :] = row.astype(y2d_ref.dtype)
            mid = jnp.dot(ah_ref[...], y2d_ref[...],
                          preferred_element_type=jnp.float32)        # (H_out, W)
            out = jnp.dot(mid.astype(jnp.bfloat16), awt_ref[...],
                          preferred_element_type=jnp.float32)        # (H_out, W_out)
            o_ref[0, 0] = out.astype(o_ref.dtype)
        else:
            # Lane-dense flat output; the wrapper reshapes back to (N,1,H,W).
            o_ref[0, 0, :] = jax.nn.sigmoid(cf_ref[0, :] + bias).astype(o_ref.dtype)


class UncerHead1:
    """JAX/Pallas port of the PyTorch UncerHead1 module (forward only)."""

    def __init__(self, input_dim=100, key=None):
        if key is None:
            key = jax.random.PRNGKey(42)
        kw_, kb_ = jax.random.split(key)
        fan_in = input_dim * 3 * 3
        bound = 1.0 / np.sqrt(fan_in)
        self.weight = jax.random.uniform(kw_, (1, input_dim, 3, 3), jnp.float32,
                                         minval=-bound, maxval=bound)
        self.bias = jax.random.uniform(kb_, (1,), jnp.float32,
                                       minval=-bound, maxval=bound)

    def __call__(self, x, scale):
        N, C, H, W = x.shape
        assert self.weight.shape[1] == C
        HW = H * W
        HWp = _round_up(HW, 128)
        upsample = scale > 1
        H_out, W_out = (int(H * scale), int(W * scale)) if upsample else (H, W)

        # ---- per-chip VMEM capacity -> channel-tile budget -----------------
        try:
            info = pltpu.get_tpu_info()
            vmem_cap = int(getattr(info, "vmem_capacity_bytes", 64 << 20))
        except Exception:  # pragma: no cover - CPU fallback / older API
            vmem_cap = 64 << 20
        budget = max(6 << 20, vmem_cap // 8)           # x-tile budget (dbl-buffered)
        per_chan = 2 * HWp * x.dtype.itemsize
        max_ct = max(8, min(128, (budget // max(per_chan, 1)) // 8 * 8))

        if C <= max_ct:
            C_TILE, C_pad = C, C
        else:
            best = None
            for cand in range(max_ct, 7, -8):          # multiples of 8, minimal padding
                waste = _round_up(C, cand) - C
                if best is None or waste < best[0]:
                    best = (waste, cand)
            C_TILE = best[1]
            C_pad = _round_up(C, C_TILE)
        n_ct = C_pad // C_TILE

        # ---- operands -------------------------------------------------------
        x2 = x.reshape(N, C, HW)                       # free (contiguous) reshape
        wmat = self.weight.reshape(C, 9)               # [c, kh*3 + kw]
        if C_pad > C:
            x2 = jnp.pad(x2, ((0, 0), (0, C_pad - C), (0, 0)))
            wmat = jnp.pad(wmat, ((0, C_pad - C), (0, 0)))

        col = jnp.arange(HW, dtype=jnp.int32) % W
        masks = jnp.stack([(col != 0).astype(jnp.float32),       # keep for kw==0
                           (col != W - 1).astype(jnp.float32)])  # keep for kw==2

        in_specs = [
            pl.BlockSpec((1, C_TILE, HW), lambda n, c: (n, c, 0)),
            pl.BlockSpec((C_TILE, 9), lambda n, c: (c, 0)),
            pl.BlockSpec(memory_space=pltpu.MemorySpace.SMEM),    # bias
            pl.BlockSpec((2, HW), lambda n, c: (0, 0)),           # column masks
        ]
        args = [x2, wmat, self.bias, masks]
        scratch = [pltpu.VMEM((9, HW), jnp.float32),              # per-tap accumulator
                   pltpu.VMEM((1, HW), jnp.float32)]              # combined conv (flat)

        if upsample:
            A_h = _bilinear_matrix(H, H_out).astype(jnp.bfloat16)      # (H_out, H)
            A_wT = _bilinear_matrix(W, W_out).T.astype(jnp.bfloat16)   # (W, W_out)
            in_specs += [pl.BlockSpec((H_out, H), lambda n, c: (0, 0)),
                         pl.BlockSpec((W, W_out), lambda n, c: (0, 0))]
            args += [A_h, A_wT]
            scratch.append(pltpu.VMEM((H, W), jnp.bfloat16))           # spatial view
            out_shape = jax.ShapeDtypeStruct((N, 1, H_out, W_out), jnp.float32)
            out_spec = pl.BlockSpec((1, 1, H_out, W_out), lambda n, c: (n, 0, 0, 0))
        else:
            out_shape = jax.ShapeDtypeStruct((N, 1, HW), jnp.float32)
            out_spec = pl.BlockSpec((1, 1, HW), lambda n, c: (n, 0, 0))

        # ---- VMEM need ((8,128)-layout padded) + limit with headroom --------
        itemsize = x.dtype.itemsize
        need = (2 * _round_up(C_TILE, 8) * HWp * itemsize     # x tile, dbl-buffered
                + 2 * _round_up(C_TILE, 8) * 128 * 4          # weights
                + 2 * 8 * HWp * 4                             # masks
                + 16 * HWp * 4                                # yacc scratch
                + 8 * HWp * 4)                                # cf scratch
        if upsample:
            need += 2 * (_round_up(H_out, 8) * _round_up(H, 128)
                         + _round_up(W, 8) * _round_up(W_out, 128)) * 2
            need += _round_up(H, 8) * _round_up(W, 128) * 2
            need += 2 * _round_up(H_out, 8) * _round_up(W_out, 128) * 4
        else:
            need += 2 * 8 * HWp * 4
        cap = min(vmem_cap - (8 << 20), 100 << 20)            # keep headroom (v7x: 56 MiB)
        vmem_limit = int(min(max(int(need * 1.25) + (4 << 20), 32 << 20), cap))

        kernel = functools.partial(_uncer_head_kernel, H=H, W=W, upsample=upsample)

        fn = pl.pallas_call(
            kernel,
            out_shape=out_shape,
            grid=(N, n_ct),
            in_specs=in_specs,
            out_specs=out_spec,
            scratch_shapes=scratch,
            compiler_params=pltpu.CompilerParams(
                dimension_semantics=("parallel", "arbitrary"),
                vmem_limit_bytes=vmem_limit),
        )
        y = fn(*args)
        if not upsample:
            y = y.reshape(N, 1, H, W)                  # free reshape back
        return y


if __name__ == "__main__":
    # small deterministic example: batch=2, channels=4, spatial=16x16, scale=2
    key = jax.random.PRNGKey(0)
    x = jax.random.normal(key, (2, 4, 16, 16), dtype=jnp.float32)

    head = UncerHead1(input_dim=4, key=jax.random.PRNGKey(42))
    scale = 2
    out = jax.block_until_ready(head(x, scale))
    assert out.shape == (2, 1, 16 * scale, 16 * scale)

    # reference: conv + sigmoid via XLA, upsample via the same bilinear matrices
    conv_ref = jax.nn.sigmoid(
        lax.conv_general_dilated(
            x, head.weight, window_strides=(1, 1), padding="SAME",
            dimension_numbers=("NCHW", "OIHW", "NCHW"),
            precision=lax.Precision.HIGHEST,
        ) + head.bias.reshape(1, 1, 1, 1)
    )
    A_h = _bilinear_matrix(16, 16 * scale)
    A_w = _bilinear_matrix(16, 16 * scale)
    up_ref = jnp.einsum("oh,nchw,pw->ncop", A_h, conv_ref, A_w,
                        precision=lax.Precision.HIGHEST)

    # scale=1 path: MXU conv at HIGHEST precision -> near-f32 accuracy
    out1 = jax.block_until_ready(head(x, 1))
    np.testing.assert_allclose(np.asarray(out1), np.asarray(conv_ref),
                               atol=5e-3, rtol=5e-3)
    # upsampled path: bf16 upsample matmuls -> looser tolerance
    np.testing.assert_allclose(np.asarray(out), np.asarray(up_ref),
                               atol=2e-2, rtol=2e-2)

    print("KERNEL_OK")
</pallas_src>

<mosaic_0001>
module attributes {stable_mosaic.version = 11 : i64} {
  func.func @_uncer_head_kernel(%arg0: i32, %arg1: i32, %arg2: memref<1x4x256xf32, #tpu.memory_space<vmem>>, %arg3: memref<4x9xf32, #tpu.memory_space<vmem>>, %arg4: memref<1xf32, #tpu.memory_space<smem>>, %arg5: memref<2x256xf32, #tpu.memory_space<vmem>>, %arg6: memref<32x16xbf16, #tpu.memory_space<vmem>>, %arg7: memref<16x32xbf16, #tpu.memory_space<vmem>>, %arg8: memref<1x1x32x32xf32, #tpu.memory_space<vmem>>, %arg9: memref<9x256xf32, #tpu.memory_space<vmem>>, %arg10: memref<1x256xf32, #tpu.memory_space<vmem>>, %arg11: memref<16x16xbf16, #tpu.memory_space<vmem>>) attributes {dimension_semantics = [#tpu.dimension_semantics<parallel>, #tpu.dimension_semantics<arbitrary>], iteration_bounds = array<i64: 2, 1>, scalar_prefetch = 0 : i64, scratch_operands = 3 : i64, tpu.core_type = #tpu.core_type<tc>, window_params = [{transform_indices = @transform_0, window_bounds = array<i64: 1, 4, 256>}, {transform_indices = @transform_1, window_bounds = array<i64: 4, 9>}, {transform_indices = @transform_2, window_bounds = array<i64: 1>}, {pipeline_mode = #tpu.pipeline_mode<synchronous>, transform_indices = @transform_3, window_bounds = array<i64: 2, 256>}, {pipeline_mode = #tpu.pipeline_mode<synchronous>, transform_indices = @transform_4, window_bounds = array<i64: 32, 16>}, {pipeline_mode = #tpu.pipeline_mode<synchronous>, transform_indices = @transform_5, window_bounds = array<i64: 16, 32>}, {transform_indices = @transform_6, window_bounds = array<i64: 1, 1, 32, 32>}]} {
    %c0_i32 = arith.constant 0 : i32
    %0 = arith.cmpi eq, %arg1, %c0_i32 : i32
    %1 = arith.extui %0 : i1 to i32
    %c0_i32_0 = arith.constant 0 : i32
    %2 = arith.cmpi ne, %1, %c0_i32_0 : i32
    scf.if %2 {
      %cst_11 = arith.constant 0.000000e+00 : f32
      %13 = vector.broadcast %cst_11 : f32 to vector<9x256xf32>
      %c0_12 = arith.constant 0 : index
      %c0_13 = arith.constant 0 : index
      %14 = vector.load %arg9[%c0_12, %c0_13] : memref<9x256xf32, #tpu.memory_space<vmem>>, vector<9x256xf32>
      tpu.vector_store %arg9[%c0_12, %c0_13], %13 {strides = array<i32>} : memref<9x256xf32, #tpu.memory_space<vmem>>, vector<9x256xf32>,
    } else {
    }
    %c0 = arith.constant 0 : index
    %c0_1 = arith.constant 0 : index
    %c0_2 = arith.constant 0 : index
    %3 = vector.load %arg2[%c0, %c0_1, %c0_2] : memref<1x4x256xf32, #tpu.memory_space<vmem>>, vector<1x4x256xf32>
    %4 = vector.shape_cast %3 : vector<1x4x256xf32> to vector<4x256xf32>
    %c0_3 = arith.constant 0 : index
    %c0_4 = arith.constant 0 : index
    %5 = vector.load %arg9[%c0_3, %c0_4] : memref<9x256xf32, #tpu.memory_space<vmem>>, vector<9x256xf32>
    %c0_5 = arith.constant 0 : index
    %c0_6 = arith.constant 0 : index
    %6 = vector.load %arg3[%c0_5, %c0_6] : memref<4x9xf32, #tpu.memory_space<vmem>>, vector<4x9xf32>
    %cst = arith.constant dense<0.000000e+00> : vector<9x256xf32>
    %7 = tpu.matmul %6, %4, %cst {dimension_numbers = #tpu.dot_dimension_numbers<[0], [0], [1], [1], [0, 1, 1, 1], [], []>, precision = #tpu.contract_precision<fp32>} : vector<4x9xf32>, vector<4x256xf32>, vector<9x256xf32> -> vector<9x256xf32>
    %8 = arith.addf %5, %7 : vector<9x256xf32>
    %c0_7 = arith.constant 0 : index
    %c0_8 = arith.constant 0 : index
    %9 = vector.load %arg9[%c0_7, %c0_8] : memref<9x256xf32, #tpu.memory_space<vmem>>, vector<9x256xf32>
    tpu.vector_store %arg9[%c0_7, %c0_8], %8 {strides = array<i32>} : memref<9x256xf32, #tpu.memory_space<vmem>>, vector<9x256xf32>,
    %c0_i32_9 = arith.constant 0 : i32
    %10 = arith.cmpi eq, %arg1, %c0_i32_9 : i32
    %11 = arith.extui %10 : i1 to i32
    %c0_i32_10 = arith.constant 0 : i32
    %12 = arith.cmpi ne, %11, %c0_i32_10 : i32
    scf.if %12 {
      %cst_11 = arith.constant 0.000000e+00 : f32
      %13 = vector.broadcast %cst_11 : f32 to vector<1x256xf32>
      %c0_12 = arith.constant 0 : index
      %c0_13 = arith.constant 0 : index
      %14 = vector.load %arg10[%c0_12, %c0_13] : memref<1x256xf32, #tpu.memory_space<vmem>>, vector<1x256xf32>
      tpu.vector_store %arg10[%c0_12, %c0_13], %13 {strides = array<i32>} : memref<1x256xf32, #tpu.memory_space<vmem>>, vector<1x256xf32>,
      %c0_14 = arith.constant 0 : index
      %c0_15 = arith.constant 0 : index
      %15 = vector.load %arg9[%c0_14, %c0_15] : memref<9x256xf32, #tpu.memory_space<vmem>>, vector<1x239xf32>
      %16 = vector.shape_cast %15 : vector<1x239xf32> to vector<239xf32>
      %c0_16 = arith.constant 0 : index
      %c17 = arith.constant 17 : index
      %17 = vector.load %arg5[%c0_16, %c17] : memref<2x256xf32, #tpu.memory_space<vmem>>, vector<1x239xf32>
      %18 = vector.shape_cast %17 : vector<1x239xf32> to vector<239xf32>
      %19 = arith.mulf %16, %18 : vector<239xf32>
      %c0_17 = arith.constant 0 : index
      %c17_18 = arith.constant 17 : index
      %20 = vector.load %arg10[%c0_17, %c17_18] : memref<1x256xf32, #tpu.memory_space<vmem>>, vector<1x239xf32>
      %21 = vector.shape_cast %20 : vector<1x239xf32> to vector<239xf32>
      %22 = arith.addf %21, %19 : vector<239xf32>
      %c0_19 = arith.constant 0 : index
      %c17_20 = arith.constant 17 : index
      %23 = vector.load %arg10[%c0_19, %c17_20] : memref<1x256xf32, #tpu.memory_space<vmem>>, vector<1x239xf32>
      %24 = vector.shape_cast %23 : vector<1x239xf32> to vector<239xf32>
      %25 = vector.shape_cast %22 : vector<239xf32> to vector<1x239xf32>
      tpu.vector_store %arg10[%c0_19, %c17_20], %25 {strides = array<i32>} : memref<1x256xf32, #tpu.memory_space<vmem>>, vector<1x239xf32>,
      %c1 = arith.constant 1 : index
      %c0_21 = arith.constant 0 : index
      %26 = vector.load %arg9[%c1, %c0_21] : memref<9x256xf32, #tpu.memory_space<vmem>>, vector<1x240xf32>
      %27 = vector.shape_cast %26 : vector<1x240xf32> to vector<240xf32>
      %c0_22 = arith.constant 0 : index
      %c16 = arith.constant 16 : index
      %28 = vector.load %arg10[%c0_22, %c16] : memref<1x256xf32, #tpu.memory_space<vmem>>, vector<1x240xf32>
      %29 = vector.shape_cast %28 : vector<1x240xf32> to vector<240xf32>
      %30 = arith.addf %29, %27 : vector<240xf32>
      %c0_23 = arith.constant 0 : index
      %c16_24 = arith.constant 16 : index
      %31 = vector.load %arg10[%c0_23, %c16_24] : memref<1x256xf32, #tpu.memory_space<vmem>>, vector<1x240xf32>
      %32 = vector.shape_cast %31 : vector<1x240xf32> to vector<240xf32>
      %33 = vector.shape_cast %30 : vector<240xf32> to vector<1x240xf32>
      tpu.vector_store %arg10[%c0_23, %c16_24], %33 {strides = array<i32>} : memref<1x256xf32, #tpu.memory_space<vmem>>, vector<1x240xf32>,
      %c2 = arith.constant 2 : index
      %c0_25 = arith.constant 0 : index
      %34 = vector.load %arg9[%c2, %c0_25] : memref<9x256xf32, #tpu.memory_space<vmem>>, vector<1x241xf32>
      %35 = vector.shape_cast %34 : vector<1x241xf32> to vector<241xf32>
      %c1_26 = arith.constant 1 : index
      %c15 = arith.constant 15 : index
      %36 = vector.load %arg5[%c1_26, %c15] : memref<2x256xf32, #tpu.memory_space<vmem>>, vector<1x241xf32>
      %37 = vector.shape_cast %36 : vector<1x241xf32> to vector<241xf32>
      %38 = arith.mulf %35, %37 : vector<241xf32>
      %c0_27 = arith.constant 0 : index
      %c15_28 = arith.constant 15 : index
      %39 = vector.load %arg10[%c0_27, %c15_28] : memref<1x256xf32, #tpu.memory_space<vmem>>, vector<1x241xf32>
      %40 = vector.shape_cast %39 : vector<1x241xf32> to vector<241xf32>
      %41 = arith.addf %40, %38 : vector<241xf32>
      %c0_29 = arith.constant 0 : index
      %c15_30 = arith.constant 15 : index
      %42 = vector.load %arg10[%c0_29, %c15_30] : memref<1x256xf32, #tpu.memory_space<vmem>>, vector<1x241xf32>
      %43 = vector.shape_cast %42 : vector<1x241xf32> to vector<241xf32>
      %44 = vector.shape_cast %41 : vector<241xf32> to vector<1x241xf32>
      tpu.vector_store %arg10[%c0_29, %c15_30], %44 {strides = array<i32>} : memref<1x256xf32, #tpu.memory_space<vmem>>, vector<1x241xf32>,
      %c3 = arith.constant 3 : index
      %c0_31 = arith.constant 0 : index
      %45 = vector.load %arg9[%c3, %c0_31] : memref<9x256xf32, #tpu.memory_space<vmem>>, vector<1x255xf32>
      %46 = vector.shape_cast %45 : vector<1x255xf32> to vector<255xf32>
      %c0_32 = arith.constant 0 : index
      %c1_33 = arith.constant 1 : index
      %47 = vector.load %arg5[%c0_32, %c1_33] : memref<2x256xf32, #tpu.memory_space<vmem>>, vector<1x255xf32>
      %48 = vector.shape_cast %47 : vector<1x255xf32> to vector<255xf32>
      %49 = arith.mulf %46, %48 : vector<255xf32>
      %c0_34 = arith.constant 0 : index
      %c1_35 = arith.constant 1 : index
      %50 = vector.load %arg10[%c0_34, %c1_35] : memref<1x256xf32, #tpu.memory_space<vmem>>, vector<1x255xf32>
      %51 = vector.shape_cast %50 : vector<1x255xf32> to vector<255xf32>
      %52 = arith.addf %51, %49 : vector<255xf32>
      %c0_36 = arith.constant 0 : index
      %c1_37 = arith.constant 1 : index
      %53 = vector.load %arg10[%c0_36, %c1_37] : memref<1x256xf32, #tpu.memory_space<vmem>>, vector<1x255xf32>
      %54 = vector.shape_cast %53 : vector<1x255xf32> to vector<255xf32>
      %55 = vector.shape_cast %52 : vector<255xf32> to vector<1x255xf32>
      tpu.vector_store %arg10[%c0_36, %c1_37], %55 {strides = array<i32>} : memref<1x256xf32, #tpu.memory_space<vmem>>, vector<1x255xf32>,
      %c4 = arith.constant 4 : index
      %c0_38 = arith.constant 0 : index
      %56 = vector.load %arg9[%c4, %c0_38] : memref<9x256xf32, #tpu.memory_space<vmem>>, vector<1x256xf32>
      %57 = vector.shape_cast %56 : vector<1x256xf32> to vector<256xf32>
      %c0_39 = arith.constant 0 : index
      %c0_40 = arith.constant 0 : index
      %58 = vector.load %arg10[%c0_39, %c0_40] : memref<1x256xf32, #tpu.memory_space<vmem>>, vector<1x256xf32>
      %59 = vector.shape_cast %58 : vector<1x256xf32> to vector<256xf32>
      %60 = arith.addf %59, %57 : vector<256xf32>
      %c0_41 = arith.constant 0 : index
      %c0_42 = arith.constant 0 : index
      %61 = vector.load %arg10[%c0_41, %c0_42] : memref<1x256xf32, #tpu.memory_space<vmem>>, vector<1x256xf32>
      %62 = vector.shape_cast %61 : vector<1x256xf32> to vector<256xf32>
      %63 = vector.shape_cast %60 : vector<256xf32> to vector<1x256xf32>
      tpu.vector_store %arg10[%c0_41, %c0_42], %63 {strides = array<i32>} : memref<1x256xf32, #tpu.memory_space<vmem>>, vector<1x256xf32>,
      %c5 = arith.constant 5 : index
      %c1_43 = arith.constant 1 : index
      %64 = vector.load %arg9[%c5, %c1_43] : memref<9x256xf32, #tpu.memory_space<vmem>>, vector<1x255xf32>
      %65 = vector.shape_cast %64 : vector<1x255xf32> to vector<255xf32>
      %c1_44 = arith.constant 1 : index
      %c0_45 = arith.constant 0 : index
      %66 = vector.load %arg5[%c1_44, %c0_45] : memref<2x256xf32, #tpu.memory_space<vmem>>, vector<1x255xf32>
      %67 = vector.shape_cast %66 : vector<1x255xf32> to vector<255xf32>
      %68 = arith.mulf %65, %67 : vector<255xf32>
      %c0_46 = arith.constant 0 : index
      %c0_47 = arith.constant 0 : index
      %69 = vector.load %arg10[%c0_46, %c0_47] : memref<1x256xf32, #tpu.memory_space<vmem>>, vector<1x255xf32>
      %70 = vector.shape_cast %69 : vector<1x255xf32> to vector<255xf32>
      %71 = arith.addf %70, %68 : vector<255xf32>
      %c0_48 = arith.constant 0 : index
      %c0_49 = arith.constant 0 : index
      %72 = vector.load %arg10[%c0_48, %c0_49] : memref<1x256xf32, #tpu.memory_space<vmem>>, vector<1x255xf32>
      %73 = vector.shape_cast %72 : vector<1x255xf32> to vector<255xf32>
      %74 = vector.shape_cast %71 : vector<255xf32> to vector<1x255xf32>
      tpu.vector_store %arg10[%c0_48, %c0_49], %74 {strides = array<i32>} : memref<1x256xf32, #tpu.memory_space<vmem>>, vector<1x255xf32>,
      %c6 = arith.constant 6 : index
      %c15_50 = arith.constant 15 : index
      %75 = vector.load %arg9[%c6, %c15_50] : memref<9x256xf32, #tpu.memory_space<vmem>>, vector<1x241xf32>
      %76 = vector.shape_cast %75 : vector<1x241xf32> to vector<241xf32>
      %c0_51 = arith.constant 0 : index
      %c0_52 = arith.constant 0 : index
      %77 = vector.load %arg5[%c0_51, %c0_52] : memref<2x256xf32, #tpu.memory_space<vmem>>, vector<1x241xf32>
      %78 = vector.shape_cast %77 : vector<1x241xf32> to vector<241xf32>
      %79 = arith.mulf %76, %78 : vector<241xf32>
      %c0_53 = arith.constant 0 : index
      %c0_54 = arith.constant 0 : index
      %80 = vector.load %arg10[%c0_53, %c0_54] : memref<1x256xf32, #tpu.memory_space<vmem>>, vector<1x241xf32>
      %81 = vector.shape_cast %80 : vector<1x241xf32> to vector<241xf32>
      %82 = arith.addf %81, %79 : vector<241xf32>
      %c0_55 = arith.constant 0 : index
      %c0_56 = arith.constant 0 : index
      %83 = vector.load %arg10[%c0_55, %c0_56] : memref<1x256xf32, #tpu.memory_space<vmem>>, vector<1x241xf32>
      %84 = vector.shape_cast %83 : vector<1x241xf32> to vector<241xf32>
      %85 = vector.shape_cast %82 : vector<241xf32> to vector<1x241xf32>
      tpu.vector_store %arg10[%c0_55, %c0_56], %85 {strides = array<i32>} : memref<1x256xf32, #tpu.memory_space<vmem>>, vector<1x241xf32>,
      %c7 = arith.constant 7 : index
      %c16_57 = arith.constant 16 : index
      %86 = vector.load %arg9[%c7, %c16_57] : memref<9x256xf32, #tpu.memory_space<vmem>>, vector<1x240xf32>
      %87 = vector.shape_cast %86 : vector<1x240xf32> to vector<240xf32>
      %c0_58 = arith.constant 0 : index
      %c0_59 = arith.constant 0 : index
      %88 = vector.load %arg10[%c0_58, %c0_59] : memref<1x256xf32, #tpu.memory_space<vmem>>, vector<1x240xf32>
      %89 = vector.shape_cast %88 : vector<1x240xf32> to vector<240xf32>
      %90 = arith.addf %89, %87 : vector<240xf32>
      %c0_60 = arith.constant 0 : index
      %c0_61 = arith.constant 0 : index
      %91 = vector.load %arg10[%c0_60, %c0_61] : memref<1x256xf32, #tpu.memory_space<vmem>>, vector<1x240xf32>
      %92 = vector.shape_cast %91 : vector<1x240xf32> to vector<240xf32>
      %93 = vector.shape_cast %90 : vector<240xf32> to vector<1x240xf32>
      tpu.vector_store %arg10[%c0_60, %c0_61], %93 {strides = array<i32>} : memref<1x256xf32, #tpu.memory_space<vmem>>, vector<1x240xf32>,
      %c8 = arith.constant 8 : index
      %c17_62 = arith.constant 17 : index
      %94 = vector.load %arg9[%c8, %c17_62] : memref<9x256xf32, #tpu.memory_space<vmem>>, vector<1x239xf32>
      %95 = vector.shape_cast %94 : vector<1x239xf32> to vector<239xf32>
      %c1_63 = arith.constant 1 : index
      %c0_64 = arith.constant 0 : index
      %96 = vector.load %arg5[%c1_63, %c0_64] : memref<2x256xf32, #tpu.memory_space<vmem>>, vector<1x239xf32>
      %97 = vector.shape_cast %96 : vector<1x239xf32> to vector<239xf32>
      %98 = arith.mulf %95, %97 : vector<239xf32>
      %c0_65 = arith.constant 0 : index
      %c0_66 = arith.constant 0 : index
      %99 = vector.load %arg10[%c0_65, %c0_66] : memref<1x256xf32, #tpu.memory_space<vmem>>, vector<1x239xf32>
      %100 = vector.shape_cast %99 : vector<1x239xf32> to vector<239xf32>
      %101 = arith.addf %100, %98 : vector<239xf32>
      %c0_67 = arith.constant 0 : index
      %c0_68 = arith.constant 0 : index
      %102 = vector.load %arg10[%c0_67, %c0_68] : memref<1x256xf32, #tpu.memory_space<vmem>>, vector<1x239xf32>
      %103 = vector.shape_cast %102 : vector<1x239xf32> to vector<239xf32>
      %104 = vector.shape_cast %101 : vector<239xf32> to vector<1x239xf32>
      tpu.vector_store %arg10[%c0_67, %c0_68], %104 {strides = array<i32>} : memref<1x256xf32, #tpu.memory_space<vmem>>, vector<1x239xf32>,
      %c0_69 = arith.constant 0 : index
      %105 = memref.load %arg4[%c0_69] : memref<1xf32, #tpu.memory_space<smem>>
      %c0_70 = arith.constant 0 : index
      %c0_71 = arith.constant 0 : index
      %106 = vector.load %arg10[%c0_70, %c0_71] : memref<1x256xf32, #tpu.memory_space<vmem>>, vector<1x16xf32>
      %107 = vector.shape_cast %106 : vector<1x16xf32> to vector<16xf32>
      %108 = vector.broadcast %105 : f32 to vector<16xf32>
      %109 = arith.addf %107, %108 : vector<16xf32>
      %110 = arith.negf %109 : vector<16xf32>
      %111 = math.exp %110 : vector<16xf32>
      %cst_72 = arith.constant 1.000000e+00 : f32
      %112 = vector.broadcast %cst_72 : f32 to vector<16xf32>
      %113 = arith.addf %112, %111 : vector<16xf32>
      %114 = arith.divf %112, %113 : vector<16xf32>
      %115 = arith.truncf %114 : vector<16xf32> to vector<16xbf16>
      %c0_73 = arith.constant 0 : index
      %c0_74 = arith.constant 0 : index
      %116 = vector.load %arg11[%c0_73, %c0_74] : memref<16x16xbf16, #tpu.memory_space<vmem>>, vector<1x16xbf16>
      %117 = vector.shape_cast %116 : vector<1x16xbf16> to vector<16xbf16>
      %118 = vector.shape_cast %115 : vector<16xbf16> to vector<1x16xbf16>
      tpu.vector_store %arg11[%c0_73, %c0_74], %118 {strides = array<i32>} : memref<16x16xbf16, #tpu.memory_space<vmem>>, vector<1x16xbf16>,
      %c0_75 = arith.constant 0 : index
      %c16_76 = arith.constant 16 : index
      %119 = vector.load %arg10[%c0_75, %c16_76] : memref<1x256xf32, #tpu.memory_space<vmem>>, vector<1x16xf32>
      %120 = vector.shape_cast %119 : vector<1x16xf32> to vector<16xf32>
      %121 = vector.broadcast %105 : f32 to vector<16xf32>
      %122 = arith.addf %120, %121 : vector<16xf32>
      %123 = arith.negf %122 : vector<16xf32>
      %124 = math.exp %123 : vector<16xf32>
      %cst_77 = arith.constant 1.000000e+00 : f32
      %125 = vector.broadcast %cst_77 : f32 to vector<16xf32>
      %126 = arith.addf %125, %124 : vector<16xf32>
      %127 = arith.divf %125, %126 : vector<16xf32>
      %128 = arith.truncf %127 : vector<16xf32> to vector<16xbf16>
      %c1_78 = arith.constant 1 : index
      %c0_79 = arith.constant 0 : index
      %129 = vector.load %arg11[%c1_78, %c0_79] : memref<16x16xbf16, #tpu.memory_space<vmem>>, vector<1x16xbf16>
      %130 = vector.shape_cast %129 : vector<1x16xbf16> to vector<16xbf16>
      %131 = vector.shape_cast %128 : vector<16xbf16> to vector<1x16xbf16>
      tpu.vector_store %arg11[%c1_78, %c0_79], %131 {strides = array<i32>} : memref<16x16xbf16, #tpu.memory_space<vmem>>, vector<1x16xbf16>,
      %c0_80 = arith.constant 0 : index
      %c32 = arith.constant 32 : index
      %132 = vector.load %arg10[%c0_80, %c32] : memref<1x256xf32, #tpu.memory_space<vmem>>, vector<1x16xf32>
      %133 = vector.shape_cast %132 : vector<1x16xf32> to vector<16xf32>
      %134 = vector.broadcast %105 : f32 to vector<16xf32>
      %135 = arith.addf %133, %134 : vector<16xf32>
      %136 = arith.negf %135 : vector<16xf32>
      %137 = math.exp %136 : vector<16xf32>
      %cst_81 = arith.constant 1.000000e+00 : f32
      %138 = vector.broadcast %cst_81 : f32 to vector<16xf32>
      %139 = arith.addf %138, %137 : vector<16xf32>
      %140 = arith.divf %138, %139 : vector<16xf32>
      %141 = arith.truncf %140 : vector<16xf32> to vector<16xbf16>
      %c2_82 = arith.constant 2 : index
      %c0_83 = arith.constant 0 : index
      %142 = vector.load %arg11[%c2_82, %c0_83] : memref<16x16xbf16, #tpu.memory_space<vmem>>, vector<1x16xbf16>
      %143 = vector.shape_cast %142 : vector<1x16xbf16> to vector<16xbf16>
      %144 = vector.shape_cast %141 : vector<16xbf16> to vector<1x16xbf16>
      tpu.vector_store %arg11[%c2_82, %c0_83], %144 {strides = array<i32>} : memref<16x16xbf16, #tpu.memory_space<vmem>>, vector<1x16xbf16>,
      %c0_84 = arith.constant 0 : index
      %c48 = arith.constant 48 : index
      %145 = vector.load %arg10[%c0_84, %c48] : memref<1x256xf32, #tpu.memory_space<vmem>>, vector<1x16xf32>
      %146 = vector.shape_cast %145 : vector<1x16xf32> to vector<16xf32>
      %147 = vector.broadcast %105 : f32 to vector<16xf32>
      %148 = arith.addf %146, %147 : vector<16xf32>
      %149 = arith.negf %148 : vector<16xf32>
      %150 = math.exp %149 : vector<16xf32>
      %cst_85 = arith.constant 1.000000e+00 : f32
      %151 = vector.broadcast %cst_85 : f32 to vector<16xf32>
      %152 = arith.addf %151, %150 : vector<16xf32>
      %153 = arith.divf %151, %152 : vector<16xf32>
      %154 = arith.truncf %153 : vector<16xf32> to vector<16xbf16>
      %c3_86 = arith.constant 3 : index
      %c0_87 = arith.constant 0 : index
      %155 = vector.load %arg11[%c3_86, %c0_87] : memref<16x16xbf16, #tpu.memory_space<vmem>>, vector<1x16xbf16>
      %156 = vector.shape_cast %155 : vector<1x16xbf16> to vector<16xbf16>
      %157 = vector.shape_cast %154 : vector<16xbf16> to vector<1x16xbf16>
      tpu.vector_store %arg11[%c3_86, %c0_87], %157 {strides = array<i32>} : memref<16x16xbf16, #tpu.memory_space<vmem>>, vector<1x16xbf16>,
      %c0_88 = arith.constant 0 : index
      %c64 = arith.constant 64 : index
      %158 = vector.load %arg10[%c0_88, %c64] : memref<1x256xf32, #tpu.memory_space<vmem>>, vector<1x16xf32>
      %159 = vector.shape_cast %158 : vector<1x16xf32> to vector<16xf32>
      %160 = vector.broadcast %105 : f32 to vector<16xf32>
      %161 = arith.addf %159, %160 : vector<16xf32>
      %162 = arith.negf %161 : vector<16xf32>
      %163 = math.exp %162 : vector<16xf32>
      %cst_89 = arith.constant 1.000000e+00 : f32
      %164 = vector.broadcast %cst_89 : f32 to vector<16xf32>
      %165 = arith.addf %164, %163 : vector<16xf32>
      %166 = arith.divf %164, %165 : vector<16xf32>
      %167 = arith.truncf %166 : vector<16xf32> to vector<16xbf16>
      %c4_90 = arith.constant 4 : index
      %c0_91 = arith.constant 0 : index
      %168 = vector.load %arg11[%c4_90, %c0_91] : memref<16x16xbf16, #tpu.memory_space<vmem>>, vector<1x16xbf16>
      %169 = vector.shape_cast %168 : vector<1x16xbf16> to vector<16xbf16>
      %170 = vector.shape_cast %167 : vector<16xbf16> to vector<1x16xbf16>
      tpu.vector_store %arg11[%c4_90, %c0_91], %170 {strides = array<i32>} : memref<16x16xbf16, #tpu.memory_space<vmem>>, vector<1x16xbf16>,
      %c0_92 = arith.constant 0 : index
      %c80 = arith.constant 80 : index
      %171 = vector.load %arg10[%c0_92, %c80] : memref<1x256xf32, #tpu.memory_space<vmem>>, vector<1x16xf32>
      %172 = vector.shape_cast %171 : vector<1x16xf32> to vector<16xf32>
      %173 = vector.broadcast %105 : f32 to vector<16xf32>
      %174 = arith.addf %172, %173 : vector<16xf32>
      %175 = arith.negf %174 : vector<16xf32>
      %176 = math.exp %175 : vector<16xf32>
      %cst_93 = arith.constant 1.000000e+00 : f32
      %177 = vector.broadcast %cst_93 : f32 to vector<16xf32>
      %178 = arith.addf %177, %176 : vector<16xf32>
      %179 = arith.divf %177, %178 : vector<16xf32>
      %180 = arith.truncf %179 : vector<16xf32> to vector<16xbf16>
      %c5_94 = arith.constant 5 : index
      %c0_95 = arith.constant 0 : index
      %181 = vector.load %arg11[%c5_94, %c0_95] : memref<16x16xbf16, #tpu.memory_space<vmem>>, vector<1x16xbf16>
      %182 = vector.shape_cast %181 : vector<1x16xbf16> to vector<16xbf16>
      %183 = vector.shape_cast %180 : vector<16xbf16> to vector<1x16xbf16>
      tpu.vector_store %arg11[%c5_94, %c0_95], %183 {strides = array<i32>} : memref<16x16xbf16, #tpu.memory_space<vmem>>, vector<1x16xbf16>,
      %c0_96 = arith.constant 0 : index
      %c96 = arith.constant 96 : index
      %184 = vector.load %arg10[%c0_96, %c96] : memref<1x256xf32, #tpu.memory_space<vmem>>, vector<1x16xf32>
      %185 = vector.shape_cast %184 : vector<1x16xf32> to vector<16xf32>
      %186 = vector.broadcast %105 : f32 to vector<16xf32>
      %187 = arith.addf %185, %186 : vector<16xf32>
      %188 = arith.negf %187 : vector<16xf32>
      %189 = math.exp %188 : vector<16xf32>
      %cst_97 = arith.constant 1.000000e+00 : f32
      %190 = vector.broadcast %cst_97 : f32 to vector<16xf32>
      %191 = arith.addf %190, %189 : vector<16xf32>
      %192 = arith.divf %190, %191 : vector<16xf32>
      %193 = arith.truncf %192 : vector<16xf32> to vector<16xbf16>
      %c6_98 = arith.constant 6 : index
      %c0_99 = arith.constant 0 : index
      %194 = vector.load %arg11[%c6_98, %c0_99] : memref<16x16xbf16, #tpu.memory_space<vmem>>, vector<1x16xbf16>
      %195 = vector.shape_cast %194 : vector<1x16xbf16> to vector<16xbf16>
      %196 = vector.shape_cast %193 : vector<16xbf16> to vector<1x16xbf16>
      tpu.vector_store %arg11[%c6_98, %c0_99], %196 {strides = array<i32>} : memref<16x16xbf16, #tpu.memory_space<vmem>>, vector<1x16xbf16>,
      %c0_100 = arith.constant 0 : index
      %c112 = arith.constant 112 : index
      %197 = vector.load %arg10[%c0_100, %c112] : memref<1x256xf32, #tpu.memory_space<vmem>>, vector<1x16xf32>
      %198 = vector.shape_cast %197 : vector<1x16xf32> to vector<16xf32>
      %199 = vector.broadcast %105 : f32 to vector<16xf32>
      %200 = arith.addf %198, %199 : vector<16xf32>
      %201 = arith.negf %200 : vector<16xf32>
      %202 = math.exp %201 : vector<16xf32>
      %cst_101 = arith.constant 1.000000e+00 : f32
      %203 = vector.broadcast %cst_101 : f32 to vector<16xf32>
      %204 = arith.addf %203, %202 : vector<16xf32>
      %205 = arith.divf %203, %204 : vector<16xf32>
      %206 = arith.truncf %205 : vector<16xf32> to vector<16xbf16>
      %c7_102 = arith.constant 7 : index
      %c0_103 = arith.constant 0 : index
      %207 = vector.load %arg11[%c7_102, %c0_103] : memref<16x16xbf16, #tpu.memory_space<vmem>>, vector<1x16xbf16>
      %208 = vector.shape_cast %207 : vector<1x16xbf16> to vector<16xbf16>
      %209 = vector.shape_cast %206 : vector<16xbf16> to vector<1x16xbf16>
      tpu.vector_store %arg11[%c7_102, %c0_103], %209 {strides = array<i32>} : memref<16x16xbf16, #tpu.memory_space<vmem>>, vector<1x16xbf16>,
      %c0_104 = arith.constant 0 : index
      %c128 = arith.constant 128 : index
      %210 = vector.load %arg10[%c0_104, %c128] : memref<1x256xf32, #tpu.memory_space<vmem>>, vector<1x16xf32>
      %211 = vector.shape_cast %210 : vector<1x16xf32> to vector<16xf32>
      %212 = vector.broadcast %105 : f32 to vector<16xf32>
      %213 = arith.addf %211, %212 : vector<16xf32>
      %214 = arith.negf %213 : vector<16xf32>
      %215 = math.exp %214 : vector<16xf32>
      %cst_105 = arith.constant 1.000000e+00 : f32
      %216 = vector.broadcast %cst_105 : f32 to vector<16xf32>
      %217 = arith.addf %216, %215 : vector<16xf32>
      %218 = arith.divf %216, %217 : vector<16xf32>
      %219 = arith.truncf %218 : vector<16xf32> to vector<16xbf16>
      %c8_106 = arith.constant 8 : index
      %c0_107 = arith.constant 0 : index
      %220 = vector.load %arg11[%c8_106, %c0_107] : memref<16x16xbf16, #tpu.memory_space<vmem>>, vector<1x16xbf16>
      %221 = vector.shape_cast %220 : vector<1x16xbf16> to vector<16xbf16>
      %222 = vector.shape_cast %219 : vector<16xbf16> to vector<1x16xbf16>
      tpu.vector_store %arg11[%c8_106, %c0_107], %222 {strides = array<i32>} : memref<16x16xbf16, #tpu.memory_space<vmem>>, vector<1x16xbf16>,
      %c0_108 = arith.constant 0 : index
      %c144 = arith.constant 144 : index
      %223 = vector.load %arg10[%c0_108, %c144] : memref<1x256xf32, #tpu.memory_space<vmem>>, vector<1x16xf32>
      %224 = vector.shape_cast %223 : vector<1x16xf32> to vector<16xf32>
      %225 = vector.broadcast %105 : f32 to vector<16xf32>
      %226 = arith.addf %224, %225 : vector<16xf32>
      %227 = arith.negf %226 : vector<16xf32>
      %228 = math.exp %227 : vector<16xf32>
      %cst_109 = arith.constant 1.000000e+00 : f32
      %229 = vector.broadcast %cst_109 : f32 to vector<16xf32>
      %230 = arith.addf %229, %228 : vector<16xf32>
      %231 = arith.divf %229, %230 : vector<16xf32>
      %232 = arith.truncf %231 : vector<16xf32> to vector<16xbf16>
      %c9 = arith.constant 9 : index
      %c0_110 = arith.constant 0 : index
      %233 = vector.load %arg11[%c9, %c0_110] : memref<16x16xbf16, #tpu.memory_space<vmem>>, vector<1x16xbf16>
      %234 = vector.shape_cast %233 : vector<1x16xbf16> to vector<16xbf16>
      %235 = vector.shape_cast %232 : vector<16xbf16> to vector<1x16xbf16>
      tpu.vector_store %arg11[%c9, %c0_110], %235 {strides = array<i32>} : memref<16x16xbf16, #tpu.memory_space<vmem>>, vector<1x16xbf16>,
      %c0_111 = arith.constant 0 : index
      %c160 = arith.constant 160 : index
      %236 = vector.load %arg10[%c0_111, %c160] : memref<1x256xf32, #tpu.memory_space<vmem>>, vector<1x16xf32>
      %237 = vector.shape_cast %236 : vector<1x16xf32> to vector<16xf32>
      %238 = vector.broadcast %105 : f32 to vector<16xf32>
      %239 = arith.addf %237, %238 : vector<16xf32>
      %240 = arith.negf %239 : vector<16xf32>
      %241 = math.exp %240 : vector<16xf32>
      %cst_112 = arith.constant 1.000000e+00 : f32
      %242 = vector.broadcast %cst_112 : f32 to vector<16xf32>
      %243 = arith.addf %242, %241 : vector<16xf32>
      %244 = arith.divf %242, %243 : vector<16xf32>
      %245 = arith.truncf %244 : vector<16xf32> to vector<16xbf16>
      %c10 = arith.constant 10 : index
      %c0_113 = arith.constant 0 : index
      %246 = vector.load %arg11[%c10, %c0_113] : memref<16x16xbf16, #tpu.memory_space<vmem>>, vector<1x16xbf16>
      %247 = vector.shape_cast %246 : vector<1x16xbf16> to vector<16xbf16>
      %248 = vector.shape_cast %245 : vector<16xbf16> to vector<1x16xbf16>
      tpu.vector_store %arg11[%c10, %c0_113], %248 {strides = array<i32>} : memref<16x16xbf16, #tpu.memory_space<vmem>>, vector<1x16xbf16>,
      %c0_114 = arith.constant 0 : index
      %c176 = arith.constant 176 : index
      %249 = vector.load %arg10[%c0_114, %c176] : memref<1x256xf32, #tpu.memory_space<vmem>>, vector<1x16xf32>
      %250 = vector.shape_cast %249 : vector<1x16xf32> to vector<16xf32>
      %251 = vector.broadcast %105 : f32 to vector<16xf32>
      %252 = arith.addf %250, %251 : vector<16xf32>
      %253 = arith.negf %252 : vector<16xf32>
      %254 = math.exp %253 : vector<16xf32>
      %cst_115 = arith.constant 1.000000e+00 : f32
      %255 = vector.broadcast %cst_115 : f32 to vector<16xf32>
      %256 = arith.addf %255, %254 : vector<16xf32>
      %257 = arith.divf %255, %256 : vector<16xf32>
      %258 = arith.truncf %257 : vector<16xf32> to vector<16xbf16>
      %c11 = arith.constant 11 : index
      %c0_116 = arith.constant 0 : index
      %259 = vector.load %arg11[%c11, %c0_116] : memref<16x16xbf16, #tpu.memory_space<vmem>>, vector<1x16xbf16>
      %260 = vector.shape_cast %259 : vector<1x16xbf16> to vector<16xbf16>
      %261 = vector.shape_cast %258 : vector<16xbf16> to vector<1x16xbf16>
      tpu.vector_store %arg11[%c11, %c0_116], %261 {strides = array<i32>} : memref<16x16xbf16, #tpu.memory_space<vmem>>, vector<1x16xbf16>,
      %c0_117 = arith.constant 0 : index
      %c192 = arith.constant 192 : index
      %262 = vector.load %arg10[%c0_117, %c192] : memref<1x256xf32, #tpu.memory_space<vmem>>, vector<1x16xf32>
      %263 = vector.shape_cast %262 : vector<1x16xf32> to vector<16xf32>
      %264 = vector.broadcast %105 : f32 to vector<16xf32>
      %265 = arith.addf %263, %264 : vector<16xf32>
      %266 = arith.negf %265 : vector<16xf32>
      %267 = math.exp %266 : vector<16xf32>
      %cst_118 = arith.constant 1.000000e+00 : f32
      %268 = vector.broadcast %cst_118 : f32 to vector<16xf32>
      %269 = arith.addf %268, %267 : vector<16xf32>
      %270 = arith.divf %268, %269 : vector<16xf32>
      %271 = arith.truncf %270 : vector<16xf32> to vector<16xbf16>
      %c12 = arith.constant 12 : index
      %c0_119 = arith.constant 0 : index
      %272 = vector.load %arg11[%c12, %c0_119] : memref<16x16xbf16, #tpu.memory_space<vmem>>, vector<1x16xbf16>
      %273 = vector.shape_cast %272 : vector<1x16xbf16> to vector<16xbf16>
      %274 = vector.shape_cast %271 : vector<16xbf16> to vector<1x16xbf16>
      tpu.vector_store %arg11[%c12, %c0_119], %274 {strides = array<i32>} : memref<16x16xbf16, #tpu.memory_space<vmem>>, vector<1x16xbf16>,
      %c0_120 = arith.constant 0 : index
      %c208 = arith.constant 208 : index
      %275 = vector.load %arg10[%c0_120, %c208] : memref<1x256xf32, #tpu.memory_space<vmem>>, vector<1x16xf32>
      %276 = vector.shape_cast %275 : vector<1x16xf32> to vector<16xf32>
      %277 = vector.broadcast %105 : f32 to vector<16xf32>
      %278 = arith.addf %276, %277 : vector<16xf32>
      %279 = arith.negf %278 : vector<16xf32>
      %280 = math.exp %279 : vector<16xf32>
      %cst_121 = arith.constant 1.000000e+00 : f32
      %281 = vector.broadcast %cst_121 : f32 to vector<16xf32>
      %282 = arith.addf %281, %280 : vector<16xf32>
      %283 = arith.divf %281, %282 : vector<16xf32>
      %284 = arith.truncf %283 : vector<16xf32> to vector<16xbf16>
      %c13 = arith.constant 13 : index
      %c0_122 = arith.constant 0 : index
      %285 = vector.load %arg11[%c13, %c0_122] : memref<16x16xbf16, #tpu.memory_space<vmem>>, vector<1x16xbf16>
      %286 = vector.shape_cast %285 : vector<1x16xbf16> to vector<16xbf16>
      %287 = vector.shape_cast %284 : vector<16xbf16> to vector<1x16xbf16>
      tpu.vector_store %arg11[%c13, %c0_122], %287 {strides = array<i32>} : memref<16x16xbf16, #tpu.memory_space<vmem>>, vector<1x16xbf16>,
      %c0_123 = arith.constant 0 : index
      %c224 = arith.constant 224 : index
      %288 = vector.load %arg10[%c0_123, %c224] : memref<1x256xf32, #tpu.memory_space<vmem>>, vector<1x16xf32>
      %289 = vector.shape_cast %288 : vector<1x16xf32> to vector<16xf32>
      %290 = vector.broadcast %105 : f32 to vector<16xf32>
      %291 = arith.addf %289, %290 : vector<16xf32>
      %292 = arith.negf %291 : vector<16xf32>
      %293 = math.exp %292 : vector<16xf32>
      %cst_124 = arith.constant 1.000000e+00 : f32
      %294 = vector.broadcast %cst_124 : f32 to vector<16xf32>
      %295 = arith.addf %294, %293 : vector<16xf32>
      %296 = arith.divf %294, %295 : vector<16xf32>
      %297 = arith.truncf %296 : vector<16xf32> to vector<16xbf16>
      %c14 = arith.constant 14 : index
      %c0_125 = arith.constant 0 : index
      %298 = vector.load %arg11[%c14, %c0_125] : memref<16x16xbf16, #tpu.memory_space<vmem>>, vector<1x16xbf16>
      %299 = vector.shape_cast %298 : vector<1x16xbf16> to vector<16xbf16>
      %300 = vector.shape_cast %297 : vector<16xbf16> to vector<1x16xbf16>
      tpu.vector_store %arg11[%c14, %c0_125], %300 {strides = array<i32>} : memref<16x16xbf16, #tpu.memory_space<vmem>>, vector<1x16xbf16>,
      %c0_126 = arith.constant 0 : index
      %c240 = arith.constant 240 : index
      %301 = vector.load %arg10[%c0_126, %c240] : memref<1x256xf32, #tpu.memory_space<vmem>>, vector<1x16xf32>
      %302 = vector.shape_cast %301 : vector<1x16xf32> to vector<16xf32>
      %303 = vector.broadcast %105 : f32 to vector<16xf32>
      %304 = arith.addf %302, %303 : vector<16xf32>
      %305 = arith.negf %304 : vector<16xf32>
      %306 = math.exp %305 : vector<16xf32>
      %cst_127 = arith.constant 1.000000e+00 : f32
      %307 = vector.broadcast %cst_127 : f32 to vector<16xf32>
      %308 = arith.addf %307, %306 : vector<16xf32>
      %309 = arith.divf %307, %308 : vector<16xf32>
      %310 = arith.truncf %309 : vector<16xf32> to vector<16xbf16>
      %c15_128 = arith.constant 15 : index
      %c0_129 = arith.constant 0 : index
      %311 = vector.load %arg11[%c15_128, %c0_129] : memref<16x16xbf16, #tpu.memory_space<vmem>>, vector<1x16xbf16>
      %312 = vector.shape_cast %311 : vector<1x16xbf16> to vector<16xbf16>
      %313 = vector.shape_cast %310 : vector<16xbf16> to vector<1x16xbf16>
      tpu.vector_store %arg11[%c15_128, %c0_129], %313 {strides = array<i32>} : memref<16x16xbf16, #tpu.memory_space<vmem>>, vector<1x16xbf16>,
      %c0_130 = arith.constant 0 : index
      %c0_131 = arith.constant 0 : index
      %314 = vector.load %arg6[%c0_130, %c0_131] : memref<32x16xbf16, #tpu.memory_space<vmem>>, vector<32x16xbf16>
      %c0_132 = arith.constant 0 : index
      %c0_133 = arith.constant 0 : index
      %315 = vector.load %arg11[%c0_132, %c0_133] : memref<16x16xbf16, #tpu.memory_space<vmem>>, vector<16x16xbf16>
      %cst_134 = arith.constant dense<0.000000e+00> : vector<32x16xf32>
      %316 = tpu.matmul %314, %315, %cst_134 {dimension_numbers = #tpu.dot_dimension_numbers<[1], [0], [0], [1], [0, 0, 1, 1], [], []>} : vector<32x16xbf16>, vector<16x16xbf16>, vector<32x16xf32> -> vector<32x16xf32>
      %317 = arith.truncf %316 : vector<32x16xf32> to vector<32x16xbf16>
      %c0_135 = arith.constant 0 : index
      %c0_136 = arith.constant 0 : index
      %318 = vector.load %arg7[%c0_135, %c0_136] : memref<16x32xbf16, #tpu.memory_space<vmem>>, vector<16x32xbf16>
      %cst_137 = arith.constant dense<0.000000e+00> : vector<32x32xf32>
      %319 = tpu.matmul %317, %318, %cst_137 {dimension_numbers = #tpu.dot_dimension_numbers<[1], [0], [0], [1], [0, 0, 1, 1], [], []>} : vector<32x16xbf16>, vector<16x32xbf16>, vector<32x32xf32> -> vector<32x32xf32>
      %c0_138 = arith.constant 0 : index
      %c0_139 = arith.constant 0 : index
      %c0_140 = arith.constant 0 : index
      %c0_141 = arith.constant 0 : index
      %320 = vector.load %arg8[%c0_138, %c0_139, %c0_140, %c0_141] : memref<1x1x32x32xf32, #tpu.memory_space<vmem>>, vector<1x1x32x32xf32>
      %321 = vector.shape_cast %320 : vector<1x1x32x32xf32> to vector<32x32xf32>
      %322 = vector.shape_cast %319 : vector<32x32xf32> to vector<1x1x32x32xf32>
      tpu.vector_store %arg8[%c0_138, %c0_139, %c0_140, %c0_141], %322 {strides = array<i32>} : memref<1x1x32x32xf32, #tpu.memory_space<vmem>>, vector<1x1x32x32xf32>,
    } else {
    }
    return
  }
  func.func @transform_0(%arg0: i32, %arg1: i32) -> (i32, i32, i32) {
    %c0_i32 = arith.constant 0 : i32
    %c0_i32_0 = arith.constant 0 : i32
    return %arg0, %arg1, %c0_i32 : i32, i32, i32
  }
  func.func @transform_1(%arg0: i32, %arg1: i32) -> (i32, i32) {
    %c0_i32 = arith.constant 0 : i32
    %c0_i32_0 = arith.constant 0 : i32
    return %arg1, %c0_i32 : i32, i32
  }
  func.func @transform_2(%arg0: i32, %arg1: i32) -> i32 {
    %c0_i32 = arith.constant 0 : i32
    %c0_i32_0 = arith.constant 0 : i32
    return %c0_i32 : i32
  }
  func.func @transform_3(%arg0: i32, %arg1: i32) -> (i32, i32) {
    %c0_i32 = arith.constant 0 : i32
    %c0_i32_0 = arith.constant 0 : i32
    %c0_i32_1 = arith.constant 0 : i32
    return %c0_i32, %c0_i32_0 : i32, i32
  }
  func.func @transform_4(%arg0: i32, %arg1: i32) -> (i32, i32) {
    %c0_i32 = arith.constant 0 : i32
    %c0_i32_0 = arith.constant 0 : i32
    %c0_i32_1 = arith.constant 0 : i32
    return %c0_i32, %c0_i32_0 : i32, i32
  }
  func.func @transform_5(%arg0: i32, %arg1: i32) -> (i32, i32) {
    %c0_i32 = arith.constant 0 : i32
    %c0_i32_0 = arith.constant 0 : i32
    %c0_i32_1 = arith.constant 0 : i32
    return %c0_i32, %c0_i32_0 : i32, i32
  }
  func.func @transform_6(%arg0: i32, %arg1: i32) -> (i32, i32, i32, i32) {
    %c0_i32 = arith.constant 0 : i32
    %c0_i32_0 = arith.constant 0 : i32
    %c0_i32_1 = arith.constant 0 : i32
    %c0_i32_2 = arith.constant 0 : i32
    return %arg0, %c0_i32, %c0_i32_0, %c0_i32_1 : i32, i32, i32, i32
  }
}

</mosaic_0001>

<llo_original>
// kernel: tpu_custom_call.1
$region0: #{tpu_custom_call.1}
  #allocation0 [shape = 'u32[]', space=smem, size = 0x4, offset = 0x4, fixed_abs, tag = 'smem constant byte address 0x4 - core index']
  #allocation1 [shape = 'u32[72,128]{1,0:T(1,128)}', space=vmem, size = 0x9000, scoped, tag = 'internal scratch']
  #allocation2 [shape = 'f32[9,256]{1,0:T(8,128)}', space=vmem, size = 0x4000, scoped, tag = 'scratch operand']
  #allocation3 [shape = 'f32[1,256]{1,0:T(1,128)}', space=vmem, size = 0x400, scoped, tag = 'scratch operand']
  #allocation4 [shape = 'bf16[16,16]{1,0:T(8,128)(2,1)}', space=vmem, size = 0x1000, scoped, tag = 'scratch operand']
  #allocation5 [shape = 'f32[1]{0:T(128)S(6)}', space=smem, size = 0x200, scoped, tag = 'scoped memory for tpu_custom_call.1']
  %s0 = inlined_call_operand.vmem [shape: f32[2,4,256], index: 0, kind: input, shape index: {}]
  %s1 = inlined_call_operand.hbm [shape: f32[4,9], index: 1, kind: input, shape index: {}]
  %s2 = inlined_call_operand.<no memory space> [shape: f32[1], index: 2, kind: input, shape index: {}]
  %s3 = inlined_call_operand.hbm [shape: f32[2,256], index: 3, kind: input, shape index: {}]
  %s4 = inlined_call_operand.vmem [shape: bf16[32,16], index: 4, kind: input, shape index: {}]
  %s5 = inlined_call_operand.vmem [shape: bf16[16,32], index: 5, kind: input, shape index: {}]
  %s6 = inlined_call_operand.hbm [shape: f32[2,1,32,32], index: 6, kind: output, shape index: {}]
  %s7 = sld [smem:[#allocation0]]
  $region73: #{tpu_custom_call.1} parent=0
    _
  %s9 = ssub.s32 1, %s7
  %s10 = scalar_select 0, %s9, %s7
  %11 = sst [smem:[#allocation5]] %s2
  $region1: #{tpu_custom_call.1} parent=0
    #allocation6 [shape = 'u8[2048]{0}', space=vmem, size = 0x800, scoped, tag = 'input window, operand 1, single buffered']
    #allocation7 [shape = 's32[2]{0}', space=sflag, size = 0x8, scoped, tag = 'scoped memory for tpu_custom_call.1']
    #allocation8 [shape = 's32[2]{0}', space=sflag, size = 0x8, scoped, tag = 'scoped memory for tpu_custom_call.1']
    #allocation9 [shape = 'u8[2048]{0}', space=vmem, size = 0x800, scoped, tag = 'input window, operand 3, single buffered']
    #allocation10 [shape = 's32[1]{0}', space=sflag, size = 0x4, scoped, tag = 'scoped memory for tpu_custom_call.1']
    #allocation11 [shape = 'u8[32768]{0}', space=vmem, size = 0x8000, scoped, tag = 'output window, operand 0']
    %12 = vsyncpa [#allocation7], 0
    %13 = vsyncpa [#allocation10], 0
    %14 = vsyncpa [#allocation8], 0
    %s15 = scalar_lea.sflag [#allocation8], 1
    %16 = vsyncpa %s15, 0
    loop: start=0, step=1, limit=4
    $region2: #{tpu_custom_call.1} parent=1 // loop_pre_header
      _
    $region3: #{tpu_custom_call.1} parent=1 // loop_header
      %s18 = sphi 0, %s22
      %p19 = scmp.ge.s32.totalorder %s18, 4
      %s25 = sphi 0, %s37
      %s26 = sphi 0, %s33
      %s27 = sphi 0, %s25
      %s28 = sphi 0, %s26
      %s29 = sphi 0, %s27
      %s30 = sphi 0, %s28
      %s42 = sphi 0, %s44
      %s45 = sphi 0, %s42
      %s46 = sphi 0, %s45
      %s62 = sphi 0, %s46
      %s68 = sphi 0, %s70
      %s71 = sphi 0, %s68
      %s72 = sphi 0, %s71
      %s88 = sphi 0, %s72
      %s92 = sphi 0, %s92
      %s94 = sphi 0, %s92
      %s95 = sphi 0, %s94
      %s109 = sphi 0, %s95
      %s113 = sphi 0, %s113
      %s115 = sphi 0, %s113
      %s116 = sphi 0, %s115
      %s130 = sphi 0, %s116
      %s134 = sphi 0, %s134
      %s136 = sphi 0, %s134
      %s137 = sphi 0, %s136
      %s151 = sphi 0, %s137
      %s155 = sphi 0, %s155
      %s157 = sphi 0, %s155
      %s158 = sphi 0, %s157
      %s172 = sphi 0, %s158
      %s178 = sphi 0, %s180
      %s181 = sphi 0, %s178
      %s182 = sphi 0, %s181
      %s198 = sphi 0, %s182
    $region4: #{tpu_custom_call.1} parent=1 // loop_header_branch
      %21 = sbr.rel (%p19) target = $region8
    $region5: #{tpu_custom_call.1} parent=1 // loop_body
      %s23 = ssub.s32 %s18, 1
      %s24 = ssub.s32 %s18, 2
      %s31 = sadd.s32 1, %s26
      %p32 = scmp.ge.s32.totalorder %s31, 1
      %s33 = scalar_select %p32, 0, %s31
      %s34 = sadd.s32 1, %s25
      %s35 = scalar_select %p32, %s34, %s25
      %p36 = scmp.ge.s32.totalorder %s35, 2
      %s37 = scalar_select %p36, 0, %s35
      %s38 = ssub.s32 %s25, %s37
      %s39 = ssub.s32 %s26, %s33
      %s40 = sor.u32 %s38, %s39
      %p41 = scmp.eq.s32.totalorder %s40, 0
      %s43 = sadd.s32 %s42, 1
      %s44 = scalar_select %p41, %s42, %s43
      %p47 = pneg %p41
      %p48 = scmp.eq.s32.totalorder %s18, 1
      %p49 = por %p47, %p48
      %p50 = scmp.ne.s32.totalorder %s42, %s45
      %p51 = scmp.eq.s32.totalorder %s18, 0
      %p52 = por %p50, %p51
      %p53 = scmp.ne.s32.totalorder %s42, %s45
      %p54 = scmp.eq.s32.totalorder %s23, 1
      %p55 = por %p53, %p54
      %p56 = scmp.ne.s32.totalorder %s45, %s46
      %p57 = scmp.eq.s32.totalorder %s23, 0
      %p58 = por %p56, %p57
      %p59 = scmp.ne.s32.totalorder %s45, %s46
      %p60 = scmp.eq.s32.totalorder %s24, 1
      %p61 = por %p59, %p60
      %p63 = scmp.ne.s32.totalorder %s46, %s62
      %p64 = scmp.eq.s32.totalorder %s24, 0
      %p65 = por %p63, %p64
      %s66 = ssub.s32 %s26, %s33
      %p67 = scmp.eq.s32.totalorder %s66, 0
      %s69 = sadd.s32 %s68, 1
      %s70 = scalar_select %p67, %s68, %s69
      %p73 = pneg %p67
      %p74 = scmp.eq.s32.totalorder %s18, 1
      %p75 = por %p73, %p74
      %p76 = scmp.ne.s32.totalorder %s68, %s71
      %p77 = scmp.eq.s32.totalorder %s18, 0
      %p78 = por %p76, %p77
      %p79 = scmp.ne.s32.totalorder %s68, %s71
      %p80 = scmp.eq.s32.totalorder %s23, 1
      %p81 = por %p79, %p80
      %p82 = scmp.ne.s32.totalorder %s71, %s72
      %p83 = scmp.eq.s32.totalorder %s23, 0
      %p84 = por %p82, %p83
      %p85 = scmp.ne.s32.totalorder %s71, %s72
      %p86 = scmp.eq.s32.totalorder %s24, 1
      %p87 = por %p85, %p86
      %p89 = scmp.ne.s32.totalorder %s72, %s88
      %p90 = scmp.eq.s32.totalorder %s24, 0
      %p91 = por %p89, %p90
      %s93 = sadd.s32 %s92, 1
      %p96 = scmp.eq.s32.totalorder %s18, 1
      %p97 = scmp.ne.s32.totalorder %s92, %s94
      %p98 = scmp.eq.s32.totalorder %s18, 0
      %p99 = por %p97, %p98
      %p100 = scmp.ne.s32.totalorder %s92, %s94
      %p101 = scmp.eq.s32.totalorder %s23, 1
      %p102 = por %p100, %p101
      %p103 = scmp.ne.s32.totalorder %s94, %s95
      %p104 = scmp.eq.s32.totalorder %s23, 0
      %p105 = por %p103, %p104
      %p106 = scmp.ne.s32.totalorder %s94, %s95
      %p107 = scmp.eq.s32.totalorder %s24, 1
      %p108 = por %p106, %p107
      %p110 = scmp.ne.s32.totalorder %s95, %s109
      %p111 = scmp.eq.s32.totalorder %s24, 0
      %p112 = por %p110, %p111
      %s114 = sadd.s32 %s113, 1
      %p117 = scmp.eq.s32.totalorder %s18, 1
      %p118 = scmp.ne.s32.totalorder %s113, %s115
      %p119 = scmp.eq.s32.totalorder %s18, 0
      %p120 = por %p118, %p119
      %p121 = scmp.ne.s32.totalorder %s113, %s115
      %p122 = scmp.eq.s32.totalorder %s23, 1
      %p123 = por %p121, %p122
      %p124 = scmp.ne.s32.totalorder %s115, %s116
      %p125 = scmp.eq.s32.totalorder %s23, 0
      %p126 = por %p124, %p125
      %p127 = scmp.ne.s32.totalorder %s115, %s116
      %p128 = scmp.eq.s32.totalorder %s24, 1
      %p129 = por %p127, %p128
      %p131 = scmp.ne.s32.totalorder %s116, %s130
      %p132 = scmp.eq.s32.totalorder %s24, 0
      %p133 = por %p131, %p132
      %s135 = sadd.s32 %s134, 1
      %p138 = scmp.eq.s32.totalorder %s18, 1
      %p139 = scmp.ne.s32.totalorder %s134, %s136
      %p140 = scmp.eq.s32.totalorder %s18, 0
      %p141 = por %p139, %p140
      %p142 = scmp.ne.s32.totalorder %s134, %s136
      %p143 = scmp.eq.s32.totalorder %s23, 1
      %p144 = por %p142, %p143
      %p145 = scmp.ne.s32.totalorder %s136, %s137
      %p146 = scmp.eq.s32.totalorder %s23, 0
      %p147 = por %p145, %p146
      %p148 = scmp.ne.s32.totalorder %s136, %s137
      %p149 = scmp.eq.s32.totalorder %s24, 1
      %p150 = por %p148, %p149
      %p152 = scmp.ne.s32.totalorder %s137, %s151
      %p153 = scmp.eq.s32.totalorder %s24, 0
      %p154 = por %p152, %p153
      %s156 = sadd.s32 %s155, 1
      %p159 = scmp.eq.s32.totalorder %s18, 1
      %p160 = scmp.ne.s32.totalorder %s155, %s157
      %p161 = scmp.eq.s32.totalorder %s18, 0
      %p162 = por %p160, %p161
      %p163 = scmp.ne.s32.totalorder %s155, %s157
      %p164 = scmp.eq.s32.totalorder %s23, 1
      %p165 = por %p163, %p164
      %p166 = scmp.ne.s32.totalorder %s157, %s158
      %p167 = scmp.eq.s32.totalorder %s23, 0
      %p168 = por %p166, %p167
      %p169 = scmp.ne.s32.totalorder %s157, %s158
      %p170 = scmp.eq.s32.totalorder %s24, 1
      %p171 = por %p169, %p170
      %p173 = scmp.ne.s32.totalorder %s158, %s172
      %p174 = scmp.eq.s32.totalorder %s24, 0
      %p175 = por %p173, %p174
      %s176 = ssub.s32 %s25, %s37
      %p177 = scmp.eq.s32.totalorder %s176, 0
      %s179 = sadd.s32 %s178, 1
      %s180 = scalar_select %p177, %s178, %s179
      %p183 = pneg %p177
      %p184 = scmp.eq.s32.totalorder %s18, 1
      %p185 = por %p183, %p184
      %p186 = scmp.ne.s32.totalorder %s178, %s181
      %p187 = scmp.eq.s32.totalorder %s18, 0
      %p188 = por %p186, %p187
      %p189 = scmp.ne.s32.totalorder %s178, %s181
      %p190 = scmp.eq.s32.totalorder %s23, 1
      %p191 = por %p189, %p190
      %p192 = scmp.ne.s32.totalorder %s181, %s182
      %p193 = scmp.eq.s32.totalorder %s23, 0
      %p194 = por %p192, %p193
      %p195 = scmp.ne.s32.totalorder %s181, %s182
      %p196 = scmp.eq.s32.totalorder %s24, 1
      %p197 = por %p195, %p196
      %p199 = scmp.ne.s32.totalorder %s182, %s198
      %p200 = scmp.eq.s32.totalorder %s24, 0
      %p201 = por %p199, %p200
      %p202 = scmp.le.s32.totalorder 1, %s18
      %p203 = scmp.lt.s32.totalorder %s18, 3
      %p204 = pnand %p202, %p203
      %p205 = pneg %p204
      // Predicated region
      $region9: #{tpu_custom_call.1} parent=5 // pred_check
        _
      $region10: #{tpu_custom_call.1} parent=5 // pred_check_branch
        %207 = sbr.rel (%p204) target = $region12
      $region11: #{tpu_custom_call.1} parent=5 // pred_region
        %s208 = ssub.s32 %s18, 1
        // Predicated region
        $region13: #{tpu_custom_call.1} parent=11 // pred_check
          %p209 = pneg %p84
        $region14: #{tpu_custom_call.1} parent=11 // pred_check_branch
          %211 = sbr.rel (%p209) target = $region16
        $region15: #{tpu_custom_call.1} parent=11 // pred_region
          %213 = vsyncadd [#allocation7], 0
          %s214 = smul.addr %s28, 4
          %s215 = scalar_lea.hbm %s1, %s214
          %s217 = sshll.u32 %s215, 4
          %s218 = int_to_ptr.hbm [resolvable:$true] %s217
          %s219 = sshll.u32 [#allocation6], 4
          %s220 = int_to_ptr.vmem [resolvable:$true] %s219
          %222 = dma.hbm_to_vmem [thread:$0]  %s218, 64, %s220, [#allocation7]
        $region16: #{tpu_custom_call.1} parent=11 // pred_fallthru
          _
        // Predicated region
        $region17: #{tpu_custom_call.1} parent=11 // pred_check
          %p223 = pneg %p105
        $region18: #{tpu_custom_call.1} parent=11 // pred_check_branch
          %225 = sbr.rel (%p223) target = $region20
        $region19: #{tpu_custom_call.1} parent=11 // pred_region
          _
        $region20: #{tpu_custom_call.1} parent=11 // pred_fallthru
          _
        // Predicated region
        $region21: #{tpu_custom_call.1} parent=11 // pred_check
          %p226 = pneg %p126
        $region22: #{tpu_custom_call.1} parent=11 // pred_check_branch
          %228 = sbr.rel (%p226) target = $region24
        $region23: #{tpu_custom_call.1} parent=11 // pred_region
          %230 = vsyncadd [#allocation10], 0
          %s232 = sshll.u32 %s3, 4
          %s233 = int_to_ptr.hbm [resolvable:$true] %s232
          %s234 = sshll.u32 [#allocation9], 4
          %s235 = int_to_ptr.vmem [resolvable:$true] %s234
          %237 = dma.hbm_to_vmem [thread:$0]  %s233, 64, %s235, [#allocation10]
        $region24: #{tpu_custom_call.1} parent=11 // pred_fallthru
          _
        // Predicated region
        $region25: #{tpu_custom_call.1} parent=11 // pred_check
          %p238 = pneg %p147
        $region26: #{tpu_custom_call.1} parent=11 // pred_check_branch
          %240 = sbr.rel (%p238) target = $region28
        $region27: #{tpu_custom_call.1} parent=11 // pred_region
          _
        $region28: #{tpu_custom_call.1} parent=11 // pred_fallthru
          _
        // Predicated region
        $region29: #{tpu_custom_call.1} parent=11 // pred_check
          %p241 = pneg %p168
        $region30: #{tpu_custom_call.1} parent=11 // pred_check_branch
          %243 = sbr.rel (%p241) target = $region32
        $region31: #{tpu_custom_call.1} parent=11 // pred_region
          _
        $region32: #{tpu_custom_call.1} parent=11 // pred_fallthru
          _
      $region12: #{tpu_custom_call.1} parent=5 // pred_fallthru
        _
      %p244 = scmp.lt.s32.totalorder %s18, 2
      // Predicated region
      $region33: #{tpu_custom_call.1} parent=5 // pred_check
        %p245 = pneg %p244
      $region34: #{tpu_custom_call.1} parent=5 // pred_check_branch
        %247 = sbr.rel (%p245) target = $region36
      $region35: #{tpu_custom_call.1} parent=5 // pred_region
        // Predicated region
        $region37: #{tpu_custom_call.1} parent=35 // pred_check
          %p248 = pneg %p52
        $region38: #{tpu_custom_call.1} parent=35 // pred_check_branch
          %250 = sbr.rel (%p248) target = $region40
        $region39: #{tpu_custom_call.1} parent=35 // pred_region
          %p251 = scmp.lt.s32.totalorder %s25, 1
          %s252 = scalar_select %p251, %s25, 1
          %p253 = scmp.lt.s32.totalorder %s26, 0
          %s254 = scalar_select %p253, %s26, 0
          %s255 = smul.addr %s254, 2
          %s256 = smul.addr %s252, 2
          %s257 = sadd.s32 %s255, %s256
          %s258 = smul.addr %s257, 4
          %s259 = scalar_lea.vmem %s0, %s258
        $region40: #{tpu_custom_call.1} parent=35 // pred_fallthru
          _
      $region36: #{tpu_custom_call.1} parent=5 // pred_fallthru
        _
      %p260 = scmp.le.s32.totalorder 1, %s18
      %p261 = scmp.lt.s32.totalorder %s18, 3
      %p262 = pnand %p260, %p261
      %p263 = pneg %p262
      // Predicated region
      $region41: #{tpu_custom_call.1} parent=5 // pred_check
        _
      $region42: #{tpu_custom_call.1} parent=5 // pred_check_branch
        %265 = sbr.rel (%p262) target = $region44
      $region43: #{tpu_custom_call.1} parent=5 // pred_region
        %s266 = ssub.s32 %s18, 1
        // Predicated region
        $region45: #{tpu_custom_call.1} parent=43 // pred_check
          %p267 = pneg %p84
        $region46: #{tpu_custom_call.1} parent=43 // pred_check_branch
          %269 = sbr.rel (%p267) target = $region48
        $region47: #{tpu_custom_call.1} parent=43 // pred_region
          %271 = dma.done [#allocation7], 64
        $region48: #{tpu_custom_call.1} parent=43 // pred_fallthru
          _
        // Predicated region
        $region49: #{tpu_custom_call.1} parent=43 // pred_check
          %p272 = pneg %p126
        $region50: #{tpu_custom_call.1} parent=43 // pred_check_branch
          %274 = sbr.rel (%p272) target = $region52
        $region51: #{tpu_custom_call.1} parent=43 // pred_region
          %276 = dma.done [#allocation10], 64
        $region52: #{tpu_custom_call.1} parent=43 // pred_fallthru
          _
        %p277 = scmp.lt.s32.totalorder %s27, 1
        %s278 = scalar_select %p277, %s27, 1
        %p279 = scmp.lt.s32.totalorder %s28, 0
        %s280 = scalar_select %p279, %s28, 0
        %s281 = smul.addr %s280, 2
        %s282 = smul.addr %s278, 2
        %s283 = sadd.s32 %s281, %s282
        %s284 = smul.addr %s283, 4
        %s285 = scalar_lea.vmem %s0, %s284
        %p286 = pneg %p58
        %p287 = pneg %p55
        %p288 = pneg %p84
        %p289 = pneg %p81
        %p290 = pneg %p105
        %p291 = pneg %p102
        %p292 = pneg %p126
        %p293 = pneg %p123
        %p294 = pneg %p147
        %p295 = pneg %p144
        %p296 = pneg %p168
        %p297 = pneg %p165
        %p298 = pneg %p194
        %p299 = pneg %p191
        %s300 = sand.u32 %s181, 1
        %s301 = scalar_lea.sflag [#allocation8], %s300
        %s302 = sand.u32 %s181, 1
        %s303 = smul.addr %s302, 32
        %s304 = scalar_lea.vmem [#allocation11], %s303
        %p305 = scmp.lt.s32.totalorder %s27, 1
        %s306 = scalar_select %p305, %s27, 1
        %p307 = scmp.lt.s32.totalorder %s28, 0
        %s308 = scalar_select %p307, %s28, 0
        %s309 = smul.addr %s308, 2
        %s310 = smul.addr %s306, 2
        %s311 = sadd.s32 %s309, %s310
        %s312 = smul.addr %s311, 4
        %s313 = scalar_lea.vmem %s0, %s312
        %p315 = scmp.eq.s32.totalorder %s28, 0
        // Predicated region
        $region53: #{tpu_custom_call.1} parent=43 // pred_check
          %p316 = pneg %p315
        $region54: #{tpu_custom_call.1} parent=43 // pred_check_branch
          %318 = sbr.rel (%p316) target = $region56
        $region55: #{tpu_custom_call.1} parent=43 // pred_region
          %319 = vst [vmem:[#allocation2] sm:$0xff] 0.0
          %320 = vst [vmem:[#allocation2 + $0x8] sm:$0xff] 0.0
          %321 = vst [vmem:[#allocation2 + $0x10] sm:$0x1] 0.0
          %322 = vst [vmem:[#allocation2 + $0x18] sm:$0x1] 0.0
        $region56: #{tpu_custom_call.1} parent=43 // pred_fallthru
          _
        %v323 = vld [vmem:[%s313] sm:$0xff]
        %v324 = vld [vmem:[#allocation2] sm:$0xff]
        %v325 = vld [vmem:[#allocation2 + $0x8] sm:$0xff]
        %v326 = vld [vmem:[#allocation2 + $0x10] sm:$0x1]
        %v327 = vld [vmem:[#allocation2 + $0x18] sm:$0x1]
        %v328 = vld [vmem:[#allocation6] sm:$0xf]
        %329 = vxpose.xlu0.b32.start [1/16] %v328, 128
        %330 = vxpose.xlu0.b32.cont [2/16] 0.0, 128
        %331 = vxpose.xlu0.b32.cont [3/16] 0.0, 128
        %332 = vxpose.xlu0.b32.cont [4/16] 0.0, 128
        %333 = vxpose.xlu0.b32.cont [5/16] 0.0, 128
        %334 = vxpose.xlu0.b32.cont [6/16] 0.0, 128
        %335 = vxpose.xlu0.b32.cont [7/16] 0.0, 128
        %336 = vxpose.xlu0.b32.cont [8/16] 0.0, 128
        %337 = vxpose.xlu0.b32.cont [9/16] 0.0, 128
        %338 = vxpose.xlu0.b32.cont [10/16] 0.0, 128
        %339 = vxpose.xlu0.b32.cont [11/16] 0.0, 128
        %340 = vxpose.xlu0.b32.cont [12/16] 0.0, 128
        %341 = vxpose.xlu0.b32.cont [13/16] 0.0, 128
        %342 = vxpose.xlu0.b32.cont [14/16] 0.0, 128
        %343 = vxpose.xlu0.b32.cont [15/16] 0.0, 128
        %344 = vxpose.xlu0.b32.end [16/16] 0.0, 128
        %v345 = vpop.trf.xlu0
        %v346 = vpop.trf.xlu0
        %v347 = vpop.trf.xlu0
        %v348 = vpop.trf.xlu0
        %v349 = vpop.trf.xlu0
        %v350 = vpop.trf.xlu0
        %v351 = vpop.trf.xlu0
        %v352 = vpop.trf.xlu0
        %v353 = vpop.trf.xlu0
        %v354 = vpop.trf.xlu0
        %v355 = vpop.trf.xlu0
        %v356 = vpop.trf.xlu0
        %v357 = vpop.trf.xlu0
        %v358 = vpop.trf.xlu0
        %v359 = vpop.trf.xlu0
        %v360 = vpop.trf.xlu0
        %362 = vst [vmem:[#allocation1] ss:$2 sm:$0xff] %v323
        %v363 = vld.sshfl [vmem:[#allocation1] sm:$0xff pattern:$0x75316420]
        %v364 = vld.sshfl [vmem:[#allocation1 + $0x8] sm:$0xff pattern:$0x75316420]
        %vm365 = vcmask 31744
        %v367 = vsel %vm365, %v345, 0
        %v370 = vsel %vm365, %v346, 0
        %vm372 = vcmask 1043456
        %v373 = vsel %vm372, %v363, 0
        %v375 = vsel %vm372, %v364, 0
        %377 = vmatpush.msra.mxu0 0.0
        %378 = vmatpush.msra.mxu0 0.0
        %379 = vmatpush.msra.mxu0 0.0
        %380 = vmatpush.msra.mxu0 0.0
        %381 = vmatpush.msra.mxu0 0.0
        %382 = vmatpush.msra.mxu0 0.0
        %383 = vmatpush.msra.mxu0 0.0
        %384 = vmatpush.msra.mxu0 0.0
        %385 = vmatpush.msra.mxu0 0.0
        %386 = vmatpush.msra.mxu0 0.0
        %387 = vmatpush.msra.mxu0 0.0
        %388 = vmatpush.msra.mxu0 0.0
        %389 = vmatpush.msra.mxu0 0.0
        %390 = vmatpush.msra.mxu0 0.0
        %391 = vmatpush.msra.mxu0 0.0
        %v392 = vand.u32 %v373, 4294901760
        %393 = vmatpush.msra.mxu0 %v392
        %v394 = vand.u32 %v367, 4294901760
        %v395 = vsub.f32 %v367, %v394
        %v396 = vand.u32 %v395, 4294901760
        %v397 = vsub.f32 %v395, %v396
        %v398 = vand.u32 %v397, 4294901760
        %399 = vmatmul.f32.gmra.mxu0 %v398
        %v400 = vpop.f32.mrf.mxu0
        %v401 = vadd.f32 0.0, %v400
        %v402 = vand.u32 %v370, 4294901760
        %v403 = vsub.f32 %v370, %v402
        %v404 = vand.u32 %v403, 4294901760
        %v405 = vsub.f32 %v403, %v404
        %v406 = vand.u32 %v405, 4294901760
        %407 = vmatmul.f32.gmra.mxu0 %v406
        %v408 = vpop.f32.mrf.mxu0
        %v409 = vadd.f32 0.0, %v408
        %410 = vdwg.mxu0
        %411 = vmatpush.msra.mxu0 0.0
        %412 = vmatpush.msra.mxu0 0.0
        %413 = vmatpush.msra.mxu0 0.0
        %414 = vmatpush.msra.mxu0 0.0
        %415 = vmatpush.msra.mxu0 0.0
        %416 = vmatpush.msra.mxu0 0.0
        %417 = vmatpush.msra.mxu0 0.0
        %418 = vmatpush.msra.mxu0 0.0
        %419 = vmatpush.msra.mxu0 0.0
        %420 = vmatpush.msra.mxu0 0.0
        %421 = vmatpush.msra.mxu0 0.0
        %422 = vmatpush.msra.mxu0 0.0
        %423 = vmatpush.msra.mxu0 0.0
        %424 = vmatpush.msra.mxu0 0.0
        %425 = vmatpush.msra.mxu0 0.0
        %v426 = vand.u32 %v373, 4294901760
        %v427 = vsub.f32 %v373, %v426
        %v428 = vand.u32 %v427, 4294901760
        %v429 = vsub.f32 %v427, %v428
        %v430 = vand.u32 %v429, 4294901760
        %431 = vmatpush.msra.mxu0 %v430
        %v432 = vand.u32 %v367, 4294901760
        %433 = vmatmul.f32.gmra.mxu0 %v432
        %v434 = vpop.f32.mrf.mxu0
        %v435 = vadd.f32 %v401, %v434
        %v436 = vand.u32 %v370, 4294901760
        %437 = vmatmul.f32.gmra.mxu0 %v436
        %v438 = vpop.f32.mrf.mxu0
        %v439 = vadd.f32 %v409, %v438
        %440 = vdwg.mxu0
        %441 = vmatpush.msra.mxu0 0.0
        %442 = vmatpush.msra.mxu0 0.0
        %443 = vmatpush.msra.mxu0 0.0
        %444 = vmatpush.msra.mxu0 0.0
        %445 = vmatpush.msra.mxu0 0.0
        %446 = vmatpush.msra.mxu0 0.0
        %447 = vmatpush.msra.mxu0 0.0
        %448 = vmatpush.msra.mxu0 0.0
        %449 = vmatpush.msra.mxu0 0.0
        %450 = vmatpush.msra.mxu0 0.0
        %451 = vmatpush.msra.mxu0 0.0
        %452 = vmatpush.msra.mxu0 0.0
        %453 = vmatpush.msra.mxu0 0.0
        %454 = vmatpush.msra.mxu0 0.0
        %455 = vmatpush.msra.mxu0 0.0
        %v456 = vand.u32 %v373, 4294901760
        %v457 = vsub.f32 %v373, %v456
        %458 = vmatpush.msra.mxu0 %v457
        %v459 = vand.u32 %v367, 4294901760
        %v460 = vsub.f32 %v367, %v459
        %461 = vmatmul.f32.gmra.mxu0 %v460
        %v462 = vpop.f32.mrf.mxu0
        %v463 = vadd.f32 %v435, %v462
        %v464 = vand.u32 %v370, 4294901760
        %v465 = vsub.f32 %v370, %v464
        %466 = vmatmul.f32.gmra.mxu0 %v465
        %v467 = vpop.f32.mrf.mxu0
        %v468 = vadd.f32 %v439, %v467
        %469 = vdwg.mxu0
        %470 = vmatpush.msra.mxu0 0.0
        %471 = vmatpush.msra.mxu0 0.0
        %472 = vmatpush.msra.mxu0 0.0
        %473 = vmatpush.msra.mxu0 0.0
        %474 = vmatpush.msra.mxu0 0.0
        %475 = vmatpush.msra.mxu0 0.0
        %476 = vmatpush.msra.mxu0 0.0
        %477 = vmatpush.msra.mxu0 0.0
        %478 = vmatpush.msra.mxu0 0.0
        %479 = vmatpush.msra.mxu0 0.0
        %480 = vmatpush.msra.mxu0 0.0
        %481 = vmatpush.msra.mxu0 0.0
        %482 = vmatpush.msra.mxu0 0.0
        %483 = vmatpush.msra.mxu0 0.0
        %484 = vmatpush.msra.mxu0 0.0
        %v485 = vand.u32 %v373, 4294901760
        %486 = vmatpush.msra.mxu0 %v485
        %v487 = vand.u32 %v367, 4294901760
        %v488 = vsub.f32 %v367, %v487
        %v489 = vand.u32 %v488, 4294901760
        %490 = vmatmul.f32.gmra.mxu0 %v489
        %v491 = vpop.f32.mrf.mxu0
        %v492 = vadd.f32 %v463, %v491
        %v493 = vand.u32 %v370, 4294901760
        %v494 = vsub.f32 %v370, %v493
        %v495 = vand.u32 %v494, 4294901760
        %496 = vmatmul.f32.gmra.mxu0 %v495
        %v497 = vpop.f32.mrf.mxu0
        %v498 = vadd.f32 %v468, %v497
        %499 = vdwg.mxu0
        %500 = vmatpush.msra.mxu0 0.0
        %501 = vmatpush.msra.mxu0 0.0
        %502 = vmatpush.msra.mxu0 0.0
        %503 = vmatpush.msra.mxu0 0.0
        %504 = vmatpush.msra.mxu0 0.0
        %505 = vmatpush.msra.mxu0 0.0
        %506 = vmatpush.msra.mxu0 0.0
        %507 = vmatpush.msra.mxu0 0.0
        %508 = vmatpush.msra.mxu0 0.0
        %509 = vmatpush.msra.mxu0 0.0
        %510 = vmatpush.msra.mxu0 0.0
        %511 = vmatpush.msra.mxu0 0.0
        %512 = vmatpush.msra.mxu0 0.0
        %513 = vmatpush.msra.mxu0 0.0
        %514 = vmatpush.msra.mxu0 0.0
        %v515 = vand.u32 %v373, 4294901760
        %v516 = vsub.f32 %v373, %v515
        %v517 = vand.u32 %v516, 4294901760
        %518 = vmatpush.msra.mxu0 %v517
        %v519 = vand.u32 %v367, 4294901760
        %520 = vmatmul.f32.gmra.mxu0 %v519
        %v521 = vpop.f32.mrf.mxu0
        %v522 = vadd.f32 %v492, %v521
        %v523 = vand.u32 %v370, 4294901760
        %524 = vmatmul.f32.gmra.mxu0 %v523
        %v525 = vpop.f32.mrf.mxu0
        %v526 = vadd.f32 %v498, %v525
        %527 = vdwg.mxu0
        %528 = vmatpush.msra.mxu0 0.0
        %529 = vmatpush.msra.mxu0 0.0
        %530 = vmatpush.msra.mxu0 0.0
        %531 = vmatpush.msra.mxu0 0.0
        %532 = vmatpush.msra.mxu0 0.0
        %533 = vmatpush.msra.mxu0 0.0
        %534 = vmatpush.msra.mxu0 0.0
        %535 = vmatpush.msra.mxu0 0.0
        %536 = vmatpush.msra.mxu0 0.0
        %537 = vmatpush.msra.mxu0 0.0
        %538 = vmatpush.msra.mxu0 0.0
        %539 = vmatpush.msra.mxu0 0.0
        %540 = vmatpush.msra.mxu0 0.0
        %541 = vmatpush.msra.mxu0 0.0
        %542 = vmatpush.msra.mxu0 0.0
        %v543 = vand.u32 %v373, 4294901760
        %544 = vmatpush.msra.mxu0 %v543
        %v545 = vand.u32 %v367, 4294901760
        %546 = vmatmul.f32.gmra.mxu0 %v545
        %v547 = vpop.f32.mrf.mxu0
        %v548 = vadd.f32 %v522, %v547
        %v549 = vand.u32 %v370, 4294901760
        %550 = vmatmul.f32.gmra.mxu0 %v549
        %v551 = vpop.f32.mrf.mxu0
        %v552 = vadd.f32 %v526, %v551
        %553 = vdwg.mxu0
        %554 = vmatpush.msra.mxu0 0.0
        %555 = vmatpush.msra.mxu0 0.0
        %556 = vmatpush.msra.mxu0 0.0
        %557 = vmatpush.msra.mxu0 0.0
        %558 = vmatpush.msra.mxu0 0.0
        %559 = vmatpush.msra.mxu0 0.0
        %560 = vmatpush.msra.mxu0 0.0
        %561 = vmatpush.msra.mxu0 0.0
        %562 = vmatpush.msra.mxu0 0.0
        %563 = vmatpush.msra.mxu0 0.0
        %564 = vmatpush.msra.mxu0 0.0
        %565 = vmatpush.msra.mxu0 0.0
        %566 = vmatpush.msra.mxu0 0.0
        %567 = vmatpush.msra.mxu0 0.0
        %568 = vmatpush.msra.mxu0 0.0
        %v569 = vand.u32 %v375, 4294901760
        %570 = vmatpush.msra.mxu0 %v569
        %v571 = vand.u32 %v367, 4294901760
        %v572 = vsub.f32 %v367, %v571
        %v573 = vand.u32 %v572, 4294901760
        %v574 = vsub.f32 %v572, %v573
        %v575 = vand.u32 %v574, 4294901760
        %576 = vmatmul.f32.gmra.mxu0 %v575
        %v577 = vpop.f32.mrf.mxu0
        %v578 = vadd.f32 0.0, %v577
        %v579 = vand.u32 %v370, 4294901760
        %v580 = vsub.f32 %v370, %v579
        %v581 = vand.u32 %v580, 4294901760
        %v582 = vsub.f32 %v580, %v581
        %v583 = vand.u32 %v582, 4294901760
        %584 = vmatmul.f32.gmra.mxu0 %v583
        %v585 = vpop.f32.mrf.mxu0
        %v586 = vadd.f32 0.0, %v585
        %587 = vdwg.mxu0
        %588 = vmatpush.msra.mxu0 0.0
        %589 = vmatpush.msra.mxu0 0.0
        %590 = vmatpush.msra.mxu0 0.0
        %591 = vmatpush.msra.mxu0 0.0
        %592 = vmatpush.msra.mxu0 0.0
        %593 = vmatpush.msra.mxu0 0.0
        %594 = vmatpush.msra.mxu0 0.0
        %595 = vmatpush.msra.mxu0 0.0
        %596 = vmatpush.msra.mxu0 0.0
        %597 = vmatpush.msra.mxu0 0.0
        %598 = vmatpush.msra.mxu0 0.0
        %599 = vmatpush.msra.mxu0 0.0
        %600 = vmatpush.msra.mxu0 0.0
        %601 = vmatpush.msra.mxu0 0.0
        %602 = vmatpush.msra.mxu0 0.0
        %v603 = vand.u32 %v375, 4294901760
        %v604 = vsub.f32 %v375, %v603
        %v605 = vand.u32 %v604, 4294901760
        %v606 = vsub.f32 %v604, %v605
        %v607 = vand.u32 %v606, 4294901760
        %608 = vmatpush.msra.mxu0 %v607
        %v609 = vand.u32 %v367, 4294901760
        %610 = vmatmul.f32.gmra.mxu0 %v609
        %v611 = vpop.f32.mrf.mxu0
        %v612 = vadd.f32 %v578, %v611
        %v613 = vand.u32 %v370, 4294901760
        %614 = vmatmul.f32.gmra.mxu0 %v613
        %v615 = vpop.f32.mrf.mxu0
        %v616 = vadd.f32 %v586, %v615
        %617 = vdwg.mxu0
        %618 = vmatpush.msra.mxu0 0.0
        %619 = vmatpush.msra.mxu0 0.0
        %620 = vmatpush.msra.mxu0 0.0
        %621 = vmatpush.msra.mxu0 0.0
        %622 = vmatpush.msra.mxu0 0.0
        %623 = vmatpush.msra.mxu0 0.0
        %624 = vmatpush.msra.mxu0 0.0
        %625 = vmatpush.msra.mxu0 0.0
        %626 = vmatpush.msra.mxu0 0.0
        %627 = vmatpush.msra.mxu0 0.0
        %628 = vmatpush.msra.mxu0 0.0
        %629 = vmatpush.msra.mxu0 0.0
        %630 = vmatpush.msra.mxu0 0.0
        %631 = vmatpush.msra.mxu0 0.0
        %632 = vmatpush.msra.mxu0 0.0
        %v633 = vand.u32 %v375, 4294901760
        %v634 = vsub.f32 %v375, %v633
        %635 = vmatpush.msra.mxu0 %v634
        %v636 = vand.u32 %v367, 4294901760
        %v637 = vsub.f32 %v367, %v636
        %638 = vmatmul.f32.gmra.mxu0 %v637
        %v639 = vpop.f32.mrf.mxu0
        %v640 = vadd.f32 %v612, %v639
        %v641 = vand.u32 %v370, 4294901760
        %v642 = vsub.f32 %v370, %v641
        %643 = vmatmul.f32.gmra.mxu0 %v642
        %v644 = vpop.f32.mrf.mxu0
        %v645 = vadd.f32 %v616, %v644
        %646 = vdwg.mxu0
        %647 = vmatpush.msra.mxu0 0.0
        %648 = vmatpush.msra.mxu0 0.0
        %649 = vmatpush.msra.mxu0 0.0
        %650 = vmatpush.msra.mxu0 0.0
        %651 = vmatpush.msra.mxu0 0.0
        %652 = vmatpush.msra.mxu0 0.0
        %653 = vmatpush.msra.mxu0 0.0
        %654 = vmatpush.msra.mxu0 0.0
        %655 = vmatpush.msra.mxu0 0.0
        %656 = vmatpush.msra.mxu0 0.0
        %657 = vmatpush.msra.mxu0 0.0
        %658 = vmatpush.msra.mxu0 0.0
        %659 = vmatpush.msra.mxu0 0.0
        %660 = vmatpush.msra.mxu0 0.0
        %661 = vmatpush.msra.mxu0 0.0
        %v662 = vand.u32 %v375, 4294901760
        %663 = vmatpush.msra.mxu0 %v662
        %v664 = vand.u32 %v367, 4294901760
        %v665 = vsub.f32 %v367, %v664
        %v666 = vand.u32 %v665, 4294901760
        %667 = vmatmul.f32.gmra.mxu0 %v666
        %v668 = vpop.f32.mrf.mxu0
        %v669 = vadd.f32 %v640, %v668
        %v670 = vand.u32 %v370, 4294901760
        %v671 = vsub.f32 %v370, %v670
        %v672 = vand.u32 %v671, 4294901760
        %673 = vmatmul.f32.gmra.mxu0 %v672
        %v674 = vpop.f32.mrf.mxu0
        %v675 = vadd.f32 %v645, %v674
        %676 = vdwg.mxu0
        %677 = vmatpush.msra.mxu0 0.0
        %678 = vmatpush.msra.mxu0 0.0
        %679 = vmatpush.msra.mxu0 0.0
        %680 = vmatpush.msra.mxu0 0.0
        %681 = vmatpush.msra.mxu0 0.0
        %682 = vmatpush.msra.mxu0 0.0
        %683 = vmatpush.msra.mxu0 0.0
        %684 = vmatpush.msra.mxu0 0.0
        %685 = vmatpush.msra.mxu0 0.0
        %686 = vmatpush.msra.mxu0 0.0
        %687 = vmatpush.msra.mxu0 0.0
        %688 = vmatpush.msra.mxu0 0.0
        %689 = vmatpush.msra.mxu0 0.0
        %690 = vmatpush.msra.mxu0 0.0
        %691 = vmatpush.msra.mxu0 0.0
        %v692 = vand.u32 %v375, 4294901760
        %v693 = vsub.f32 %v375, %v692
        %v694 = vand.u32 %v693, 4294901760
        %695 = vmatpush.msra.mxu0 %v694
        %v696 = vand.u32 %v367, 4294901760
        %697 = vmatmul.f32.gmra.mxu0 %v696
        %v698 = vpop.f32.mrf.mxu0
        %v699 = vadd.f32 %v669, %v698
        %v700 = vand.u32 %v370, 4294901760
        %701 = vmatmul.f32.gmra.mxu0 %v700
        %v702 = vpop.f32.mrf.mxu0
        %v703 = vadd.f32 %v675, %v702
        %704 = vdwg.mxu0
        %705 = vmatpush.msra.mxu0 0.0
        %706 = vmatpush.msra.mxu0 0.0
        %707 = vmatpush.msra.mxu0 0.0
        %708 = vmatpush.msra.mxu0 0.0
        %709 = vmatpush.msra.mxu0 0.0
        %710 = vmatpush.msra.mxu0 0.0
        %711 = vmatpush.msra.mxu0 0.0
        %712 = vmatpush.msra.mxu0 0.0
        %713 = vmatpush.msra.mxu0 0.0
        %714 = vmatpush.msra.mxu0 0.0
        %715 = vmatpush.msra.mxu0 0.0
        %716 = vmatpush.msra.mxu0 0.0
        %717 = vmatpush.msra.mxu0 0.0
        %718 = vmatpush.msra.mxu0 0.0
        %719 = vmatpush.msra.mxu0 0.0
        %v720 = vand.u32 %v375, 4294901760
        %721 = vmatpush.msra.mxu0 %v720
        %v722 = vand.u32 %v367, 4294901760
        %723 = vmatmul.f32.gmra.mxu0 %v722
        %v724 = vpop.f32.mrf.mxu0
        %v725 = vadd.f32 %v699, %v724
        %v726 = vand.u32 %v370, 4294901760
        %727 = vmatmul.f32.gmra.mxu0 %v726
        %v728 = vpop.f32.mrf.mxu0
        %v729 = vadd.f32 %v703, %v728
        %730 = vdwg.mxu0
        %v731 = vadd.f32 %v324, %v548
        %v732 = vadd.f32 %v325, %v725
        %v733 = vadd.f32 %v326, %v552
        %v734 = vadd.f32 %v327, %v729
        %735 = vst [vmem:[#allocation2] sm:$0xff] %v731
        %736 = vst [vmem:[#allocation2 + $0x8] sm:$0xff] %v732
        %737 = vst [vmem:[#allocation2 + $0x10] sm:$0x1] %v733
        %738 = vst [vmem:[#allocation2 + $0x18] sm:$0x1] %v734
        // Predicated region
        $region57: #{tpu_custom_call.1} parent=43 // pred_check
          %p739 = pneg %p315
        $region58: #{tpu_custom_call.1} parent=43 // pred_check_branch
          %741 = sbr.rel (%p739) target = $region60
        $region59: #{tpu_custom_call.1} parent=43 // pred_region
          %v742 = vlaneseq
          %vm743 = vcmp.ge.s32.totalorder %v742, 0
          %vm744 = vcmp.lt.s32.totalorder %v742, 256
          %vm745 = vmand %vm743, %vm744
          %746 = vst.msk [vmem:[#allocation3] sm:$0x3] %vm745, 0.0
          %v747 = vld [vmem:[#allocation2] ss:$8 sm:$0x3]
          %v748 = vld [vmem:[#allocation9] ss:$2 sm:$0x3]
          %750 = vrot.lane.b32.xlu0 %v748, 111
          %v751 = vpop.permute.xlu0 %750
          %v752 = vrot.slane %v751, 1
          %vm753 = vcmask 908288
          %v754 = vsel %vm753, %v751, %v752
          %v756 = vmul.f32 %v747, %v754
          %v757 = vld [vmem:[#allocation3] sm:$0x3]
          %759 = vrot.lane.b32.xlu0 %v756, 17
          %v760 = vpop.permute.xlu0 %759
          %v761 = vrot.slane %v760, 7
          %vm762 = vcmask 138240
          %v763 = vsel %vm762, %v761, %v760
          %v765 = vadd.f32 %v757, %v763
          %vm766 = vcmp.ge.s32.totalorder %v742, 17
          %vm767 = vmand %vm766, %vm744
          %768 = vst.msk [vmem:[#allocation3] sm:$0x3] %vm767, %v765
          %s769 = scalar_lea.vmem [#allocation2], 1
          %v770 = vld [vmem:[%s769] ss:$8 sm:$0x3]
          %v771 = vld [vmem:[#allocation3] sm:$0x3]
          %773 = vrot.lane.b32.xlu0 %v770, 16
          %v774 = vpop.permute.xlu0 %773
          %v775 = vrot.slane %v774, 7
          %vm776 = vcmask 130048
          %v777 = vsel %vm776, %v775, %v774
          %v779 = vadd.f32 %v771, %v777
          %vm780 = vcmp.ge.s32.totalorder %v742, 16
          %vm781 = vmand %vm780, %vm744
          %782 = vst.msk [vmem:[#allocation3] sm:$0x3] %vm781, %v779
          %s783 = scalar_lea.vmem [#allocation2], 2
          %v784 = vld [vmem:[%s783] ss:$8 sm:$0x3]
          %s785 = scalar_lea.vmem [#allocation9], 1
          %v786 = vld [vmem:[%s785] ss:$2 sm:$0x3]
          %788 = vrot.lane.b32.xlu0 %v786, 113
          %v789 = vpop.permute.xlu0 %788
          %v790 = vrot.slane %v789, 1
          %vm791 = vcmask 924672
          %v792 = vsel %vm791, %v789, %v790
          %v794 = vmul.f32 %v784, %v792
          %v795 = vld [vmem:[#allocation3] sm:$0x3]
          %797 = vrot.lane.b32.xlu0 %v794, 15
          %v798 = vpop.permute.xlu0 %797
          %v799 = vrot.slane %v798, 7
          %vm800 = vcmask 121856
          %v801 = vsel %vm800, %v799, %v798
          %v803 = vadd.f32 %v795, %v801
          %vm804 = vcmp.ge.s32.totalorder %v742, 15
          %vm805 = vmand %vm804, %vm744
          %806 = vst.msk [vmem:[#allocation3] sm:$0x3] %vm805, %v803
          %s807 = scalar_lea.vmem [#allocation2], 3
          %v808 = vld [vmem:[%s807] ss:$8 sm:$0x3]
          %v809 = vld [vmem:[#allocation9] ss:$2 sm:$0x3]
          %811 = vrot.lane.b32.xlu0 %v809, 127
          %v812 = vpop.permute.xlu0 %811
          %v813 = vrot.slane %v812, 1
          %vm814 = vcmask 1039360
          %v815 = vsel %vm814, %v812, %v813
          %v817 = vmul.f32 %v808, %v815
          %v818 = vld [vmem:[#allocation3] sm:$0x3]
          %820 = vrot.lane.b32.xlu0 %v817, 1
          %v821 = vpop.permute.xlu0 %820
          %v822 = vrot.slane %v821, 7
          %vm823 = vcmask 7168
          %v824 = vsel %vm823, %v822, %v821
          %v826 = vadd.f32 %v818, %v824
          %vm827 = vcmp.ge.s32.totalorder %v742, 1
          %vm828 = vmand %vm827, %vm744
          %829 = vst.msk [vmem:[#allocation3] sm:$0x3] %vm828, %v826
          %s830 = scalar_lea.vmem [#allocation2], 4
          %v831 = vld [vmem:[%s830] ss:$8 sm:$0x3]
          %v832 = vld [vmem:[#allocation3] sm:$0x3]
          %v833 = vadd.f32 %v832, %v831
          %834 = vst.msk [vmem:[#allocation3] sm:$0x3] %vm745, %v833
          %s835 = scalar_lea.vmem [#allocation2], 5
          %v836 = vld [vmem:[%s835] ss:$8 sm:$0x3]
          %v837 = vld [vmem:[%s785] ss:$2 sm:$0x3]
          %839 = vrot.lane.b32.xlu0 %v837, 1
          %v840 = vpop.permute.xlu0 %839
          %v841 = vrot.slane %v840, 7
          %v842 = vsel %vm823, %v841, %v840
          %v844 = vmul.f32 %v836, %v842
          %v845 = vld [vmem:[#allocation3] sm:$0x3]
          %847 = vrot.lane.b32.xlu0 %v844, 127
          %v848 = vpop.permute.xlu0 %847
          %v849 = vrot.slane %v848, 1
          %v850 = vsel %vm814, %v848, %v849
          %v852 = vadd.f32 %v845, %v850
          %vm853 = vcmp.lt.s32.totalorder %v742, 255
          %vm854 = vmand %vm743, %vm853
          %855 = vst.msk [vmem:[#allocation3] sm:$0x3] %vm854, %v852
          %s856 = scalar_lea.vmem [#allocation2], 6
          %v857 = vld [vmem:[%s856] ss:$8 sm:$0x3]
          %v858 = vld [vmem:[#allocation9] ss:$2 sm:$0x3]
          %860 = vrot.lane.b32.xlu0 %v858, 15
          %v861 = vpop.permute.xlu0 %860
          %v862 = vrot.slane %v861, 7
          %v863 = vsel %vm800, %v862, %v861
          %v865 = vmul.f32 %v857, %v863
          %v866 = vld [vmem:[#allocation3] sm:$0x3]
          %868 = vrot.lane.b32.xlu0 %v865, 113
          %v869 = vpop.permute.xlu0 %868
          %v870 = vrot.slane %v869, 1
          %v871 = vsel %vm791, %v869, %v870
          %v873 = vadd.f32 %v866, %v871
          %vm874 = vcmp.lt.s32.totalorder %v742, 241
          %vm875 = vmand %vm743, %vm874
          %876 = vst.msk [vmem:[#allocation3] sm:$0x3] %vm875, %v873
          %s877 = scalar_lea.vmem [#allocation2], 7
          %v878 = vld [vmem:[%s877] ss:$8 sm:$0x3]
          %v879 = vld [vmem:[#allocation3] sm:$0x3]
          %881 = vrot.lane.b32.xlu0 %v878, 112
          %v882 = vpop.permute.xlu0 %881
          %v883 = vrot.slane %v882, 1
          %vm884 = vcmask 916480
          %v885 = vsel %vm884, %v882, %v883
          %v887 = vadd.f32 %v879, %v885
          %vm888 = vcmp.lt.s32.totalorder %v742, 240
          %vm889 = vmand %vm743, %vm888
          %890 = vst.msk [vmem:[#allocation3] sm:$0x3] %vm889, %v887
          %s891 = scalar_lea.vmem [#allocation2], 16
          %v892 = vld [vmem:[%s891] ss:$8 sm:$0x3]
          %v893 = vld [vmem:[%s785] ss:$2 sm:$0x3]
          %895 = vrot.lane.b32.xlu0 %v893, 17
          %v896 = vpop.permute.xlu0 %895
          %v897 = vrot.slane %v896, 7
          %v898 = vsel %vm762, %v897, %v896
          %v900 = vmul.f32 %v892, %v898
          %v901 = vld [vmem:[#allocation3] sm:$0x3]
          %903 = vrot.lane.b32.xlu0 %v900, 111
          %v904 = vpop.permute.xlu0 %903
          %v905 = vrot.slane %v904, 1
          %v906 = vsel %vm753, %v904, %v905
          %v908 = vadd.f32 %v901, %v906
          %vm909 = vcmp.lt.s32.totalorder %v742, 239
          %vm910 = vmand %vm743, %vm909
          %911 = vst.msk [vmem:[#allocation3] sm:$0x3] %vm910, %v908
          %s912 = sld [smem:[#allocation5]]
          %v913 = vld [vmem:[#allocation3] sm:$0x1]
          %v914 = vstv %s912
          %v915 = vadd.f32 %v913, %v914
          %v916 = vxor.u32 %v915, 2147483648
          %v917 = vmul.f32 %v916, 1.442695
          %v918 = vpow.pop %v917
          %v919 = vadd.f32 %v918, 1.0
          %v920 = vrcp.pop %v919
          %v921 = vmul.f32 %v919, %v920
          %v922 = vsub.f32 1.0, %v921
          %v923 = vmul.f32 %v920, %v922
          %v924 = vadd.f32 %v920, %v923
          %vm925 = vweird.f32 %v919
          %vm926 = vweird.f32 %v920
          %vm927 = vmor %vm925, %vm926
          %v928 = vsel %vm927, %v920, %v924
          %v929 = vand.u32 2147483647, %v919
          %vm930 = vcmp.eq.f32.partialorder %v929, 8.507059e+37
          %v931 = vand.u32 %v919, 2147483648
          %v932 = vor.u32 1.1754944e-38, %v931
          %v933 = vsel %vm930, %v932, %v928
          %v934 = vmul.f32 1.0, %v933
          %v935 = vpack.c.bf16 %v934, %v934
          %vm936 = vcmask 122880
          %vm937 = vsmask.f32 256
          %vm938 = vmand %vm936, %vm937
          %v939 = vld [vmem:[#allocation4] sm:$0x1]
          %v940 = vsel %vm938, %v935, %v939
          %941 = vst [vmem:[#allocation4] sm:$0x1] %v940
          %v942 = vld [vmem:[#allocation3] sm:$0x1]
          %v943 = vadd.f32 %v942, %v914
          %v944 = vxor.u32 %v943, 2147483648
          %v945 = vmul.f32 %v944, 1.442695
          %v946 = vpow.pop %v945
          %v947 = vadd.f32 %v946, 1.0
          %v948 = vrcp.pop %v947
          %v949 = vmul.f32 %v947, %v948
          %v950 = vsub.f32 1.0, %v949
          %v951 = vmul.f32 %v948, %v950
          %v952 = vadd.f32 %v948, %v951
          %vm953 = vweird.f32 %v947
          %vm954 = vweird.f32 %v948
          %vm955 = vmor %vm953, %vm954
          %v956 = vsel %vm955, %v948, %v952
          %v957 = vand.u32 2147483647, %v947
          %vm958 = vcmp.eq.f32.partialorder %v957, 8.507059e+37
          %v959 = vand.u32 %v947, 2147483648
          %v960 = vor.u32 1.1754944e-38, %v959
          %v961 = vsel %vm958, %v960, %v956
          %v962 = vmul.f32 1.0, %v961
          %v963 = vpack.c.bf16 %v962, %v962
          %v965 = vshll.u32 %v963, 16
          %967 = vrot.lane.b32.xlu0 %v965, 112
          %v968 = vpop.permute.xlu0 %967
          %vm970 = vsmask.f32 7938
          %vm971 = vmand %vm936, %vm970
          %v972 = vld [vmem:[#allocation4] sm:$0x1]
          %v973 = vsel %vm971, %v968, %v972
          %974 = vst [vmem:[#allocation4] sm:$0x1] %v973
          %v975 = vld [vmem:[#allocation3] sm:$0x1]
          %v976 = vadd.f32 %v975, %v914
          %v977 = vxor.u32 %v976, 2147483648
          %v978 = vmul.f32 %v977, 1.442695
          %v979 = vpow.pop %v978
          %v980 = vadd.f32 %v979, 1.0
          %v981 = vrcp.pop %v980
          %v982 = vmul.f32 %v980, %v981
          %v983 = vsub.f32 1.0, %v982
          %v984 = vmul.f32 %v981, %v983
          %v985 = vadd.f32 %v981, %v984
          %vm986 = vweird.f32 %v980
          %vm987 = vweird.f32 %v981
          %vm988 = vmor %vm986, %vm987
          %v989 = vsel %vm988, %v981, %v985
          %v990 = vand.u32 2147483647, %v980
          %vm991 = vcmp.eq.f32.partialorder %v990, 8.507059e+37
          %v992 = vand.u32 %v980, 2147483648
          %v993 = vor.u32 1.1754944e-38, %v992
          %v994 = vsel %vm991, %v993, %v989
          %v995 = vmul.f32 1.0, %v994
          %v996 = vpack.c.bf16 %v995, %v995
          %v998 = vrot.slane %v996, 7
          %999 = vrot.lane.b32.xlu0 %v998, 96
          %v1000 = vpop.permute.xlu0 %999
          %vm1002 = vcmask 123905
          %vm1003 = vsmask.f32 1280
          %vm1004 = vmand %vm1002, %vm1003
          %v1005 = vld [vmem:[#allocation4] sm:$0x2]
          %v1006 = vsel %vm1004, %v1000, %v1005
          %1007 = vst [vmem:[#allocation4] sm:$0x2] %v1006
          %v1008 = vld [vmem:[#allocation3] sm:$0x1]
          %v1009 = vadd.f32 %v1008, %v914
          %v1010 = vxor.u32 %v1009, 2147483648
          %v1011 = vmul.f32 %v1010, 1.442695
          %v1012 = vpow.pop %v1011
          %v1013 = vadd.f32 %v1012, 1.0
          %v1014 = vrcp.pop %v1013
          %v1015 = vmul.f32 %v1013, %v1014
          %v1016 = vsub.f32 1.0, %v1015
          %v1017 = vmul.f32 %v1014, %v1016
          %v1018 = vadd.f32 %v1014, %v1017
          %vm1019 = vweird.f32 %v1013
          %vm1020 = vweird.f32 %v1014
          %vm1021 = vmor %vm1019, %vm1020
          %v1022 = vsel %vm1021, %v1014, %v1018
          %v1023 = vand.u32 2147483647, %v1013
          %vm1024 = vcmp.eq.f32.partialorder %v1023, 8.507059e+37
          %v1025 = vand.u32 %v1013, 2147483648
          %v1026 = vor.u32 1.1754944e-38, %v1025
          %v1027 = vsel %vm1024, %v1026, %v1022
          %v1028 = vmul.f32 1.0, %v1027
          %v1029 = vpack.c.bf16 %v1028, %v1028
          %v1031 = vshll.u32 %v1029, 16
          %v1033 = vrot.slane %v1031, 7
          %1034 = vrot.lane.b32.xlu0 %v1033, 80
          %v1035 = vpop.permute.xlu0 %1034
          %vm1037 = vsmask.f32 7942
          %vm1038 = vmand %vm1002, %vm1037
          %v1039 = vld [vmem:[#allocation4] sm:$0x2]
          %v1040 = vsel %vm1038, %v1035, %v1039
          %1041 = vst [vmem:[#allocation4] sm:$0x2] %v1040
          %v1042 = vld [vmem:[#allocation3] sm:$0x1]
          %v1043 = vadd.f32 %v1042, %v914
          %v1044 = vxor.u32 %v1043, 2147483648
          %v1045 = vmul.f32 %v1044, 1.442695
          %v1046 = vpow.pop %v1045
          %v1047 = vadd.f32 %v1046, 1.0
          %v1048 = vrcp.pop %v1047
          %v1049 = vmul.f32 %v1047, %v1048
          %v1050 = vsub.f32 1.0, %v1049
          %v1051 = vmul.f32 %v1048, %v1050
          %v1052 = vadd.f32 %v1048, %v1051
          %vm1053 = vweird.f32 %v1047
          %vm1054 = vweird.f32 %v1048
          %vm1055 = vmor %vm1053, %vm1054
          %v1056 = vsel %vm1055, %v1048, %v1052
          %v1057 = vand.u32 2147483647, %v1047
          %vm1058 = vcmp.eq.f32.partialorder %v1057, 8.507059e+37
          %v1059 = vand.u32 %v1047, 2147483648
          %v1060 = vor.u32 1.1754944e-38, %v1059
          %v1061 = vsel %vm1058, %v1060, %v1056
          %v1062 = vmul.f32 1.0, %v1061
          %v1063 = vpack.c.bf16 %v1062, %v1062
          %v1065 = vrot.slane %v1063, 6
          %1066 = vrot.lane.b32.xlu0 %v1065, 64
          %v1067 = vpop.permute.xlu0 %1066
          %vm1069 = vcmask 124930
          %vm1070 = vsmask.f32 2304
          %vm1071 = vmand %vm1069, %vm1070
          %v1072 = vld [vmem:[#allocation4] sm:$0x4]
          %v1073 = vsel %vm1071, %v1067, %v1072
          %1074 = vst [vmem:[#allocation4] sm:$0x4] %v1073
          %v1075 = vld [vmem:[#allocation3] sm:$0x1]
          %v1076 = vadd.f32 %v1075, %v914
          %v1077 = vxor.u32 %v1076, 2147483648
          %v1078 = vmul.f32 %v1077, 1.442695
          %v1079 = vpow.pop %v1078
          %v1080 = vadd.f32 %v1079, 1.0
          %v1081 = vrcp.pop %v1080
          %v1082 = vmul.f32 %v1080, %v1081
          %v1083 = vsub.f32 1.0, %v1082
          %v1084 = vmul.f32 %v1081, %v1083
          %v1085 = vadd.f32 %v1081, %v1084
          %vm1086 = vweird.f32 %v1080
          %vm1087 = vweird.f32 %v1081
          %vm1088 = vmor %vm1086, %vm1087
          %v1089 = vsel %vm1088, %v1081, %v1085
          %v1090 = vand.u32 2147483647, %v1080
          %vm1091 = vcmp.eq.f32.partialorder %v1090, 8.507059e+37
          %v1092 = vand.u32 %v1080, 2147483648
          %v1093 = vor.u32 1.1754944e-38, %v1092
          %v1094 = vsel %vm1091, %v1093, %v1089
          %v1095 = vmul.f32 1.0, %v1094
          %v1096 = vpack.c.bf16 %v1095, %v1095
          %v1098 = vshll.u32 %v1096, 16
          %v1100 = vrot.slane %v1098, 6
          %1101 = vrot.lane.b32.xlu0 %v1100, 48
          %v1102 = vpop.permute.xlu0 %1101
          %vm1104 = vsmask.f32 7946
          %vm1105 = vmand %vm1069, %vm1104
          %v1106 = vld [vmem:[#allocation4] sm:$0x4]
          %v1107 = vsel %vm1105, %v1102, %v1106
          %1108 = vst [vmem:[#allocation4] sm:$0x4] %v1107
          %v1109 = vld [vmem:[#allocation3] sm:$0x1]
          %v1110 = vadd.f32 %v1109, %v914
          %v1111 = vxor.u32 %v1110, 2147483648
          %v1112 = vmul.f32 %v1111, 1.442695
          %v1113 = vpow.pop %v1112
          %v1114 = vadd.f32 %v1113, 1.0
          %v1115 = vrcp.pop %v1114
          %v1116 = vmul.f32 %v1114, %v1115
          %v1117 = vsub.f32 1.0, %v1116
          %v1118 = vmul.f32 %v1115, %v1117
          %v1119 = vadd.f32 %v1115, %v1118
          %vm1120 = vweird.f32 %v1114
          %vm1121 = vweird.f32 %v1115
          %vm1122 = vmor %vm1120, %vm1121
          %v1123 = vsel %vm1122, %v1115, %v1119
          %v1124 = vand.u32 2147483647, %v1114
          %vm1125 = vcmp.eq.f32.partialorder %v1124, 8.507059e+37
          %v1126 = vand.u32 %v1114, 2147483648
          %v1127 = vor.u32 1.1754944e-38, %v1126
          %v1128 = vsel %vm1125, %v1127, %v1123
          %v1129 = vmul.f32 1.0, %v1128
          %v1130 = vpack.c.bf16 %v1129, %v1129
          %v1132 = vrot.slane %v1130, 5
          %1133 = vrot.lane.b32.xlu0 %v1132, 32
          %v1134 = vpop.permute.xlu0 %1133
          %vm1136 = vcmask 125955
          %vm1137 = vsmask.f32 3328
          %vm1138 = vmand %vm1136, %vm1137
          %v1139 = vld [vmem:[#allocation4] sm:$0x8]
          %v1140 = vsel %vm1138, %v1134, %v1139
          %1141 = vst [vmem:[#allocation4] sm:$0x8] %v1140
          %v1142 = vld [vmem:[#allocation3] sm:$0x1]
          %v1143 = vadd.f32 %v1142, %v914
          %v1144 = vxor.u32 %v1143, 2147483648
          %v1145 = vmul.f32 %v1144, 1.442695
          %v1146 = vpow.pop %v1145
          %v1147 = vadd.f32 %v1146, 1.0
          %v1148 = vrcp.pop %v1147
          %v1149 = vmul.f32 %v1147, %v1148
          %v1150 = vsub.f32 1.0, %v1149
          %v1151 = vmul.f32 %v1148, %v1150
          %v1152 = vadd.f32 %v1148, %v1151
          %vm1153 = vweird.f32 %v1147
          %vm1154 = vweird.f32 %v1148
          %vm1155 = vmor %vm1153, %vm1154
          %v1156 = vsel %vm1155, %v1148, %v1152
          %v1157 = vand.u32 2147483647, %v1147
          %vm1158 = vcmp.eq.f32.partialorder %v1157, 8.507059e+37
          %v1159 = vand.u32 %v1147, 2147483648
          %v1160 = vor.u32 1.1754944e-38, %v1159
          %v1161 = vsel %vm1158, %v1160, %v1156
          %v1162 = vmul.f32 1.0, %v1161
          %v1163 = vpack.c.bf16 %v1162, %v1162
          %v1165 = vshll.u32 %v1163, 16
          %v1167 = vrot.slane %v1165, 5
          %1168 = vrot.lane.b32.xlu0 %v1167, 16
          %v1169 = vpop.permute.xlu0 %1168
          %vm1171 = vsmask.f32 7950
          %vm1172 = vmand %vm1136, %vm1171
          %v1173 = vld [vmem:[#allocation4] sm:$0x8]
          %v1174 = vsel %vm1172, %v1169, %v1173
          %1175 = vst [vmem:[#allocation4] sm:$0x8] %v1174
          %v1176 = vld [vmem:[#allocation3 + $0x1] sm:$0x1]
          %v1177 = vadd.f32 %v1176, %v914
          %v1178 = vxor.u32 %v1177, 2147483648
          %v1179 = vmul.f32 %v1178, 1.442695
          %v1180 = vpow.pop %v1179
          %v1181 = vadd.f32 %v1180, 1.0
          %v1182 = vrcp.pop %v1181
          %v1183 = vmul.f32 %v1181, %v1182
          %v1184 = vsub.f32 1.0, %v1183
          %v1185 = vmul.f32 %v1182, %v1184
          %v1186 = vadd.f32 %v1182, %v1185
          %vm1187 = vweird.f32 %v1181
          %vm1188 = vweird.f32 %v1182
          %vm1189 = vmor %vm1187, %vm1188
          %v1190 = vsel %vm1189, %v1182, %v1186
          %v1191 = vand.u32 2147483647, %v1181
          %vm1192 = vcmp.eq.f32.partialorder %v1191, 8.507059e+37
          %v1193 = vand.u32 %v1181, 2147483648
          %v1194 = vor.u32 1.1754944e-38, %v1193
          %v1195 = vsel %vm1192, %v1194, %v1190
          %v1196 = vmul.f32 1.0, %v1195
          %v1197 = vpack.c.bf16 %v1196, %v1196
          %v1198 = vld [vmem:[#allocation4 + $0x4] sm:$0x1]
          %v1199 = vsel %vm938, %v1197, %v1198
          %1200 = vst [vmem:[#allocation4 + $0x4] sm:$0x1] %v1199
          %v1201 = vld [vmem:[#allocation3 + $0x1] sm:$0x1]
          %v1202 = vadd.f32 %v1201, %v914
          %v1203 = vxor.u32 %v1202, 2147483648
          %v1204 = vmul.f32 %v1203, 1.442695
          %v1205 = vpow.pop %v1204
          %v1206 = vadd.f32 %v1205, 1.0
          %v1207 = vrcp.pop %v1206
          %v1208 = vmul.f32 %v1206, %v1207
          %v1209 = vsub.f32 1.0, %v1208
          %v1210 = vmul.f32 %v1207, %v1209
          %v1211 = vadd.f32 %v1207, %v1210
          %vm1212 = vweird.f32 %v1206
          %vm1213 = vweird.f32 %v1207
          %vm1214 = vmor %vm1212, %vm1213
          %v1215 = vsel %vm1214, %v1207, %v1211
          %v1216 = vand.u32 2147483647, %v1206
          %vm1217 = vcmp.eq.f32.partialorder %v1216, 8.507059e+37
          %v1218 = vand.u32 %v1206, 2147483648
          %v1219 = vor.u32 1.1754944e-38, %v1218
          %v1220 = vsel %vm1217, %v1219, %v1215
          %v1221 = vmul.f32 1.0, %v1220
          %v1222 = vpack.c.bf16 %v1221, %v1221
          %v1224 = vshll.u32 %v1222, 16
          %1226 = vrot.lane.b32.xlu0 %v1224, 112
          %v1227 = vpop.permute.xlu0 %1226
          %v1229 = vld [vmem:[#allocation4 + $0x4] sm:$0x1]
          %v1230 = vsel %vm971, %v1227, %v1229
          %1231 = vst [vmem:[#allocation4 + $0x4] sm:$0x1] %v1230
          %v1232 = vld [vmem:[#allocation3 + $0x1] sm:$0x1]
          %v1233 = vadd.f32 %v1232, %v914
          %v1234 = vxor.u32 %v1233, 2147483648
          %v1235 = vmul.f32 %v1234, 1.442695
          %v1236 = vpow.pop %v1235
          %v1237 = vadd.f32 %v1236, 1.0
          %v1238 = vrcp.pop %v1237
          %v1239 = vmul.f32 %v1237, %v1238
          %v1240 = vsub.f32 1.0, %v1239
          %v1241 = vmul.f32 %v1238, %v1240
          %v1242 = vadd.f32 %v1238, %v1241
          %vm1243 = vweird.f32 %v1237
          %vm1244 = vweird.f32 %v1238
          %vm1245 = vmor %vm1243, %vm1244
          %v1246 = vsel %vm1245, %v1238, %v1242
          %v1247 = vand.u32 2147483647, %v1237
          %vm1248 = vcmp.eq.f32.partialorder %v1247, 8.507059e+37
          %v1249 = vand.u32 %v1237, 2147483648
          %v1250 = vor.u32 1.1754944e-38, %v1249
          %v1251 = vsel %vm1248, %v1250, %v1246
          %v1252 = vmul.f32 1.0, %v1251
          %v1253 = vpack.c.bf16 %v1252, %v1252
          %v1255 = vrot.slane %v1253, 7
          %1256 = vrot.lane.b32.xlu0 %v1255, 96
          %v1257 = vpop.permute.xlu0 %1256
          %v1259 = vld [vmem:[#allocation4 + $0x4] sm:$0x2]
          %v1260 = vsel %vm1004, %v1257, %v1259
          %1261 = vst [vmem:[#allocation4 + $0x4] sm:$0x2] %v1260
          %v1262 = vld [vmem:[#allocation3 + $0x1] sm:$0x1]
          %v1263 = vadd.f32 %v1262, %v914
          %v1264 = vxor.u32 %v1263, 2147483648
          %v1265 = vmul.f32 %v1264, 1.442695
          %v1266 = vpow.pop %v1265
          %v1267 = vadd.f32 %v1266, 1.0
          %v1268 = vrcp.pop %v1267
          %v1269 = vmul.f32 %v1267, %v1268
          %v1270 = vsub.f32 1.0, %v1269
          %v1271 = vmul.f32 %v1268, %v1270
          %v1272 = vadd.f32 %v1268, %v1271
          %vm1273 = vweird.f32 %v1267
          %vm1274 = vweird.f32 %v1268
          %vm1275 = vmor %vm1273, %vm1274
          %v1276 = vsel %vm1275, %v1268, %v1272
          %v1277 = vand.u32 2147483647, %v1267
          %vm1278 = vcmp.eq.f32.partialorder %v1277, 8.507059e+37
          %v1279 = vand.u32 %v1267, 2147483648
          %v1280 = vor.u32 1.1754944e-38, %v1279
          %v1281 = vsel %vm1278, %v1280, %v1276
          %v1282 = vmul.f32 1.0, %v1281
          %v1283 = vpack.c.bf16 %v1282, %v1282
          %v1285 = vshll.u32 %v1283, 16
          %v1287 = vrot.slane %v1285, 7
          %1288 = vrot.lane.b32.xlu0 %v1287, 80
          %v1289 = vpop.permute.xlu0 %1288
          %v1291 = vld [vmem:[#allocation4 + $0x4] sm:$0x2]
          %v1292 = vsel %vm1038, %v1289, %v1291
          %1293 = vst [vmem:[#allocation4 + $0x4] sm:$0x2] %v1292
          %v1294 = vld [vmem:[#allocation3 + $0x1] sm:$0x1]
          %v1295 = vadd.f32 %v1294, %v914
          %v1296 = vxor.u32 %v1295, 2147483648
          %v1297 = vmul.f32 %v1296, 1.442695
          %v1298 = vpow.pop %v1297
          %v1299 = vadd.f32 %v1298, 1.0
          %v1300 = vrcp.pop %v1299
          %v1301 = vmul.f32 %v1299, %v1300
          %v1302 = vsub.f32 1.0, %v1301
          %v1303 = vmul.f32 %v1300, %v1302
          %v1304 = vadd.f32 %v1300, %v1303
          %vm1305 = vweird.f32 %v1299
          %vm1306 = vweird.f32 %v1300
          %vm1307 = vmor %vm1305, %vm1306
          %v1308 = vsel %vm1307, %v1300, %v1304
          %v1309 = vand.u32 2147483647, %v1299
          %vm1310 = vcmp.eq.f32.partialorder %v1309, 8.507059e+37
          %v1311 = vand.u32 %v1299, 2147483648
          %v1312 = vor.u32 1.1754944e-38, %v1311
          %v1313 = vsel %vm1310, %v1312, %v1308
          %v1314 = vmul.f32 1.0, %v1313
          %v1315 = vpack.c.bf16 %v1314, %v1314
          %v1317 = vrot.slane %v1315, 6
          %1318 = vrot.lane.b32.xlu0 %v1317, 64
          %v1319 = vpop.permute.xlu0 %1318
          %v1321 = vld [vmem:[#allocation4 + $0x4] sm:$0x4]
          %v1322 = vsel %vm1071, %v1319, %v1321
          %1323 = vst [vmem:[#allocation4 + $0x4] sm:$0x4] %v1322
          %v1324 = vld [vmem:[#allocation3 + $0x1] sm:$0x1]
          %v1325 = vadd.f32 %v1324, %v914
          %v1326 = vxor.u32 %v1325, 2147483648
          %v1327 = vmul.f32 %v1326, 1.442695
          %v1328 = vpow.pop %v1327
          %v1329 = vadd.f32 %v1328, 1.0
          %v1330 = vrcp.pop %v1329
          %v1331 = vmul.f32 %v1329, %v1330
          %v1332 = vsub.f32 1.0, %v1331
          %v1333 = vmul.f32 %v1330, %v1332
          %v1334 = vadd.f32 %v1330, %v1333
          %vm1335 = vweird.f32 %v1329
          %vm1336 = vweird.f32 %v1330
          %vm1337 = vmor %vm1335, %vm1336
          %v1338 = vsel %vm1337, %v1330, %v1334
          %v1339 = vand.u32 2147483647, %v1329
          %vm1340 = vcmp.eq.f32.partialorder %v1339, 8.507059e+37
          %v1341 = vand.u32 %v1329, 2147483648
          %v1342 = vor.u32 1.1754944e-38, %v1341
          %v1343 = vsel %vm1340, %v1342, %v1338
          %v1344 = vmul.f32 1.0, %v1343
          %v1345 = vpack.c.bf16 %v1344, %v1344
          %v1347 = vshll.u32 %v1345, 16
          %v1349 = vrot.slane %v1347, 6
          %1350 = vrot.lane.b32.xlu0 %v1349, 48
          %v1351 = vpop.permute.xlu0 %1350
          %v1353 = vld [vmem:[#allocation4 + $0x4] sm:$0x4]
          %v1354 = vsel %vm1105, %v1351, %v1353
          %1355 = vst [vmem:[#allocation4 + $0x4] sm:$0x4] %v1354
          %v1356 = vld [vmem:[#allocation3 + $0x1] sm:$0x1]
          %v1357 = vadd.f32 %v1356, %v914
          %v1358 = vxor.u32 %v1357, 2147483648
          %v1359 = vmul.f32 %v1358, 1.442695
          %v1360 = vpow.pop %v1359
          %v1361 = vadd.f32 %v1360, 1.0
          %v1362 = vrcp.pop %v1361
          %v1363 = vmul.f32 %v1361, %v1362
          %v1364 = vsub.f32 1.0, %v1363
          %v1365 = vmul.f32 %v1362, %v1364
          %v1366 = vadd.f32 %v1362, %v1365
          %vm1367 = vweird.f32 %v1361
          %vm1368 = vweird.f32 %v1362
          %vm1369 = vmor %vm1367, %vm1368
          %v1370 = vsel %vm1369, %v1362, %v1366
          %v1371 = vand.u32 2147483647, %v1361
          %vm1372 = vcmp.eq.f32.partialorder %v1371, 8.507059e+37
          %v1373 = vand.u32 %v1361, 2147483648
          %v1374 = vor.u32 1.1754944e-38, %v1373
          %v1375 = vsel %vm1372, %v1374, %v1370
          %v1376 = vmul.f32 1.0, %v1375
          %v1377 = vpack.c.bf16 %v1376, %v1376
          %v1379 = vrot.slane %v1377, 5
          %1380 = vrot.lane.b32.xlu0 %v1379, 32
          %v1381 = vpop.permute.xlu0 %1380
          %v1383 = vld [vmem:[#allocation4 + $0x4] sm:$0x8]
          %v1384 = vsel %vm1138, %v1381, %v1383
          %1385 = vst [vmem:[#allocation4 + $0x4] sm:$0x8] %v1384
          %v1386 = vld [vmem:[#allocation3 + $0x1] sm:$0x1]
          %v1387 = vadd.f32 %v1386, %v914
          %v1388 = vxor.u32 %v1387, 2147483648
          %v1389 = vmul.f32 %v1388, 1.442695
          %v1390 = vpow.pop %v1389
          %v1391 = vadd.f32 %v1390, 1.0
          %v1392 = vrcp.pop %v1391
          %v1393 = vmul.f32 %v1391, %v1392
          %v1394 = vsub.f32 1.0, %v1393
          %v1395 = vmul.f32 %v1392, %v1394
          %v1396 = vadd.f32 %v1392, %v1395
          %vm1397 = vweird.f32 %v1391
          %vm1398 = vweird.f32 %v1392
          %vm1399 = vmor %vm1397, %vm1398
          %v1400 = vsel %vm1399, %v1392, %v1396
          %v1401 = vand.u32 2147483647, %v1391
          %vm1402 = vcmp.eq.f32.partialorder %v1401, 8.507059e+37
          %v1403 = vand.u32 %v1391, 2147483648
          %v1404 = vor.u32 1.1754944e-38, %v1403
          %v1405 = vsel %vm1402, %v1404, %v1400
          %v1406 = vmul.f32 1.0, %v1405
          %v1407 = vpack.c.bf16 %v1406, %v1406
          %v1409 = vshll.u32 %v1407, 16
          %v1411 = vrot.slane %v1409, 5
          %1412 = vrot.lane.b32.xlu0 %v1411, 16
          %v1413 = vpop.permute.xlu0 %1412
          %v1415 = vld [vmem:[#allocation4 + $0x4] sm:$0x8]
          %v1416 = vsel %vm1172, %v1413, %v1415
          %1417 = vst [vmem:[#allocation4 + $0x4] sm:$0x8] %v1416
          %v1418 = vld [vmem:[%s4] sm:$0xf]
          %v1419 = vld [vmem:[%s4 + $0x4] sm:$0xf]
          %v1420 = vld [vmem:[%s4 + $0x8] sm:$0xf]
          %v1421 = vld [vmem:[%s4 + $0xc] sm:$0xf]
          %v1422 = vld [vmem:[#allocation4] sm:$0xf]
          %v1423 = vld [vmem:[#allocation4 + $0x4] sm:$0xf]
          %v1428 = vunpack.c.l.b16 %v1418
          %v1429 = vunpack.c.l.b16 %v1419
          %v1430 = vunpack.c.l.b16 %v1420
          %v1431 = vunpack.c.l.b16 %v1421
          %v1432 = vpack.c.b16 %v1429, %v1428
          %v1433 = vpack.c.b16 %v1431, %v1430
          %v1436 = vunpack.c.l.b16 %v1422
          %v1437 = vunpack.c.l.b16 %v1423
          %v1438 = vpack.c.b16 %v1437, %v1436
          %v1441 = vsel %vm776, %v1432, 0
          %v1444 = vsel %vm776, %v1433, 0
          %1446 = vmatpush.bf16.msra.mxu0 0
          %1447 = vmatpush.bf16.msra.mxu0 0
          %1448 = vmatpush.bf16.msra.mxu0 0
          %1449 = vmatpush.bf16.msra.mxu0 0
          %1450 = vmatpush.bf16.msra.mxu0 0
          %1451 = vmatpush.bf16.msra.mxu0 0
          %1452 = vmatpush.bf16.msra.mxu0 0
          %1453 = vmatpush.bf16.msra.mxu0 %v1438
          %1454 = vmatmul.bf16.gmra.mxu0 %v1441
          %v1455 = vpop.f32.mrf.mxu0
          %v1456 = vadd.f32 0.0, %v1455
          %v1457 = vpop.f32.mrf.mxu0
          %v1458 = vadd.f32 0.0, %v1457
          %1459 = vmatmul.bf16.gmra.mxu0 %v1444
          %v1460 = vpop.f32.mrf.mxu0
          %v1461 = vadd.f32 0.0, %v1460
          %v1462 = vpop.f32.mrf.mxu0
          %v1463 = vadd.f32 0.0, %v1462
          %1464 = vdwg.mxu0
          %v1465 = vpack.c.bf16 %v1458, %v1456
          %v1466 = vpack.c.bf16 %v1463, %v1461
          %v1467 = vld [vmem:[%s5] sm:$0xf]
          %v1468 = vld [vmem:[%s5 + $0x4] sm:$0xf]
          %v1471 = vunpack.c.l.b16 %v1467
          %v1472 = vunpack.c.l.b16 %v1468
          %v1473 = vpack.c.b16 %v1472, %v1471
          %v1476 = vsel %vm776, %v1465, 0
          %v1479 = vsel %vm776, %v1466, 0
          %1481 = vmatpush.bf16.msra.mxu0 0
          %1482 = vmatpush.bf16.msra.mxu0 0
          %1483 = vmatpush.bf16.msra.mxu0 0
          %1484 = vmatpush.bf16.msra.mxu0 0
          %1485 = vmatpush.bf16.msra.mxu0 0
          %1486 = vmatpush.bf16.msra.mxu0 0
          %1487 = vmatpush.bf16.msra.mxu0 0
          %1488 = vmatpush.bf16.msra.mxu0 %v1473
          %1489 = vmatmul.bf16.gmra.mxu0 %v1476
          %v1490 = vpop.f32.mrf.mxu0
          %v1491 = vadd.f32 0.0, %v1490
          %v1492 = vpop.f32.mrf.mxu0
          %v1493 = vadd.f32 0.0, %v1492
          %1494 = vmatmul.bf16.gmra.mxu0 %v1479
          %v1495 = vpop.f32.mrf.mxu0
          %v1496 = vadd.f32 0.0, %v1495
          %v1497 = vpop.f32.mrf.mxu0
          %v1498 = vadd.f32 0.0, %v1497
          %1499 = vdwg.mxu0
          %vm1500 = vcmask 261120
          %1501 = vst.msk [vmem:[%s304] sm:$0xff] %vm1500, %v1491
          %1502 = vst.msk [vmem:[%s304 + $0x8] sm:$0xff] %vm1500, %v1493
          %1503 = vst.msk [vmem:[%s304 + $0x10] sm:$0xff] %vm1500, %v1496
          %1504 = vst.msk [vmem:[%s304 + $0x18] sm:$0xff] %vm1500, %v1498
        $region60: #{tpu_custom_call.1} parent=43 // pred_fallthru
          _
        %s1505 = sand.u32 %s181, 1
        %s1506 = scalar_lea.sflag [#allocation8], %s1505
        %s1507 = sand.u32 %s181, 1
        %s1508 = smul.addr %s1507, 32
        %s1509 = scalar_lea.vmem [#allocation11], %s1508
        // Predicated region
        $region61: #{tpu_custom_call.1} parent=43 // pred_check
          %p1510 = pneg %p191
        $region62: #{tpu_custom_call.1} parent=43 // pred_check_branch
          %1512 = sbr.rel (%p1510) target = $region64
        $region63: #{tpu_custom_call.1} parent=43 // pred_region
          %1514 = vsyncadd %s1506, 0
          %s1515 = smul.addr %s27, 4
          %s1516 = smul.addr %s1515, 8
          %s1517 = scalar_lea.hbm %s6, %s1516
          %s1518 = sshll.u32 %s1509, 4
          %s1519 = int_to_ptr.vmem [resolvable:$true] %s1518
          %s1520 = sshll.u32 %s1517, 4
          %s1521 = int_to_ptr.hbm [resolvable:$true] %s1520
          %1526 = dma.vmem_to_hbm [thread:$0]  %s1519, 512, %s1521, %s1506, 128, 128, 8
        $region64: #{tpu_custom_call.1} parent=43 // pred_fallthru
          _
      $region44: #{tpu_custom_call.1} parent=5 // pred_fallthru
        _
      %p1527 = scmp.le.s32.totalorder 2, %s18
      // Predicated region
      $region65: #{tpu_custom_call.1} parent=5 // pred_check
        %p1528 = pneg %p1527
      $region66: #{tpu_custom_call.1} parent=5 // pred_check_branch
        %1530 = sbr.rel (%p1528) target = $region68
      $region67: #{tpu_custom_call.1} parent=5 // pred_region
        %s1531 = ssub.s32 %s18, 2
        // Predicated region
        $region69: #{tpu_custom_call.1} parent=67 // pred_check
          %p1532 = pneg %p197
        $region70: #{tpu_custom_call.1} parent=67 // pred_check_branch
          %1534 = sbr.rel (%p1532) target = $region72
        $region71: #{tpu_custom_call.1} parent=67 // pred_region
          %s1535 = sand.u32 %s182, 1
          %s1536 = scalar_lea.sflag [#allocation8], %s1535
          %s1537 = sand.u32 %s182, 1
          %s1538 = smul.addr %s1537, 32
          %s1539 = scalar_lea.vmem [#allocation11], %s1538
          %1541 = dma.done %s1536, 512
        $region72: #{tpu_custom_call.1} parent=67 // pred_fallthru
          _
      $region68: #{tpu_custom_call.1} parent=5 // pred_fallthru
        _
    $region6: #{tpu_custom_call.1} parent=1 // loop_footer
      %s22 = sadd.s32 1, %s18
    $region7: #{tpu_custom_call.1} parent=1 // loop_footer_branch
      %17 = sbr.rel target = $region3
    $region8: #{tpu_custom_call.1} parent=1 // loop_exit
      _
    %1542 = vsyncpa [#allocation7], 1
    %s1543 = scalar_lea.sflag [#allocation7], 1
    %1544 = vsyncpa %s1543, 1
    %1545 = vsyncpa [#allocation10], 1
    %1546 = vsyncpa [#allocation8], 1
    %s1547 = scalar_lea.sflag [#allocation8], 1
    %1548 = vsyncpa %s1547, 1

</llo_original>
